<compile_context>
chip_gen: v7x
topology: tpu7x:2x2x1
jax: 0.10.0
libtpu: 0.0.40
codegen_flags: <defaults>
</compile_context>

<pallas_src>
import functools

import jax
import jax.numpy as jnp
from jax.experimental import pallas as pl
from jax.experimental.pallas import tpu as pltpu


# ---------------------------------------------------------------------------
# Pallas kernel: grid = (batch, layer).  One grid step == one DecoderLayer for
# one batch element.  The hidden state is carried in out_ref (resident in VMEM
# across the layer axis; written back to HBM once per batch element).
# ---------------------------------------------------------------------------
def _decoder_stack_kernel(h0_ref, wqkv_ref, wo_ref, w1_ref, w2_ref,
                          bqkv_ref, vec_ref, out_ref, *, n_heads, d_head):
    layer = pl.program_id(1)
    _, S, D = h0_ref.shape
    H, Dh = n_heads, d_head
    Dff = w1_ref.shape[1]
    inv_sqrt_dh = 1.0 / float(Dh) ** 0.5
    f32, bf16 = jnp.float32, jnp.bfloat16

    # Seed the carried hidden state with (x + pe) on the first layer.
    @pl.when(layer == 0)
    def _():
        out_ref[...] = h0_ref[...]

    h = out_ref[0]                                   # (S, D) float32 carry

    # Packed per-layer vector params: one (8, P) buffer.
    vec = vec_ref[...]
    b_o = vec[0:1, :D]
    ln1_g, ln1_b = vec[1:2, :D], vec[2:3, :D]
    b1 = vec[3:4, :Dff]
    b2 = vec[4:5, :D]
    ln2_g, ln2_b = vec[5:6, :D], vec[6:7, :D]

    def layer_norm(y, g, b):
        mu = jnp.mean(y, axis=-1, keepdims=True)
        yc = y - mu
        var = jnp.mean(yc * yc, axis=-1, keepdims=True)
        return yc * jax.lax.rsqrt(var + 1e-5) * g + b

    # ---- multi-head self-attention: heads batched in 3D contractions --------
    hb = jnp.broadcast_to(h.astype(bf16)[None], (H, S, D))          # (H,S,D)
    qkv = jnp.einsum("hsd,hdf->hsf", hb, wqkv_ref[...],
                     preferred_element_type=f32) + bqkv_ref[...]    # (H,S,3Dh)
    q = qkv[:, :, 0:Dh].astype(bf16)
    k = qkv[:, :, Dh:2 * Dh].astype(bf16)
    v = qkv[:, :, 2 * Dh:3 * Dh].astype(bf16)

    s = jnp.einsum("hqd,hkd->hqk", q, k,
                   preferred_element_type=f32) * inv_sqrt_dh        # (H,S,S)
    s = s - jnp.max(s, axis=-1, keepdims=True)
    p = jnp.exp(s)
    p = p * pl.reciprocal(jnp.sum(p, axis=-1, keepdims=True), approx=True)

    ctx = jnp.einsum("hqk,hkd->hqd", p.astype(bf16), v,
                     preferred_element_type=f32)                    # (H,S,Dh)
    # Fold the head concat into the output projection: per-head (Dh,D) blocks of
    # Wo, summed over heads == concat(heads) @ Wo.
    proj = jnp.einsum("hqd,hde->hqe", ctx.astype(bf16), wo_ref[...],
                      preferred_element_type=f32)                   # (H,S,D)
    mha = jnp.sum(proj, axis=0) + b_o
    h1 = layer_norm(h + mha, ln1_g, ln1_b)           # residual + LN (mhra)

    # ---- position-wise feed-forward (Linear -> ReLU -> Linear) --------------
    ff = jnp.dot(h1.astype(bf16), w1_ref[...], preferred_element_type=f32) + b1
    ff = jnp.maximum(ff, 0.0)
    ff = jnp.dot(ff.astype(bf16), w2_ref[...], preferred_element_type=f32) + b2
    h2 = layer_norm(h1 + ff, ln2_g, ln2_b)           # residual + LN (ff)

    out_ref[...] = h2[None]                          # carry / final output


# ---------------------------------------------------------------------------
# Wrapper
# ---------------------------------------------------------------------------
@functools.partial(jax.jit, static_argnames=("n_heads", "d_head"))
def transformer_forward(x, pe, params, *, n_heads, d_head):
    """x: (B, S, d_model) -> (B, S, d_model)."""
    B, S, D = x.shape
    wqkv, wo = params["wqkv"], params["wo"]
    w1, w2 = params["w1"], params["w2"]
    bqkv, vec = params["bqkv"], params["vec"]
    L = wqkv.shape[0]
    H, Dh = n_heads, d_head
    Dff = w1.shape[2]
    P = vec.shape[2]

    # Embedding + positional encoding outside the kernel (drop_emb == identity).
    h0 = (x + pe[None]).astype(jnp.float32)

    per_layer_bytes = (wqkv.nbytes + wo.nbytes + w1.nbytes + w2.nbytes
                       + bqkv.nbytes + vec.nbytes) // L
    act_bytes = h0.nbytes // B
    vmem_limit = int(min(64 * 2 ** 20,
                         max(16 * 2 ** 20,
                             4 * per_layer_bytes + 16 * act_bytes)))

    flops = 2 * B * L * S * (D * 3 * H * Dh + 2 * H * S * Dh
                             + H * Dh * D + 2 * D * Dff)
    cost = pl.CostEstimate(flops=int(flops),
                           transcendentals=int(B * L * H * S * S),
                           bytes_accessed=int(2 * h0.nbytes
                                              + B * L * per_layer_bytes))

    kernel = functools.partial(_decoder_stack_kernel, n_heads=H, d_head=Dh)
    return pl.pallas_call(
        kernel,
        out_shape=jax.ShapeDtypeStruct((B, S, D), jnp.float32),
        grid=(B, L),
        in_specs=[
            pl.BlockSpec((1, S, D), lambda b, l: (b, 0, 0)),              # h0
            pl.BlockSpec((None, H, D, 3 * Dh), lambda b, l: (l, 0, 0, 0)),  # Wqkv
            pl.BlockSpec((None, H, Dh, D), lambda b, l: (l, 0, 0, 0)),      # Wo
            pl.BlockSpec((None, D, Dff), lambda b, l: (l, 0, 0)),           # W1
            pl.BlockSpec((None, Dff, D), lambda b, l: (l, 0, 0)),           # W2
            pl.BlockSpec((None, H, 1, 3 * Dh), lambda b, l: (l, 0, 0, 0)),  # bqkv
            pl.BlockSpec((None, 8, P), lambda b, l: (l, 0, 0)),             # vec
        ],
        out_specs=pl.BlockSpec((1, S, D), lambda b, l: (b, 0, 0)),
        input_output_aliases={0: 0},            # h0 buffer reused as the output
        compiler_params=pltpu.CompilerParams(
            dimension_semantics=("parallel", "arbitrary"),
            vmem_limit_bytes=vmem_limit),
        cost_estimate=cost,
    )(h0, wqkv, wo, w1, w2, bqkv, vec)


def positional_encoding(seq_len, d_model):
    """fastai PositionalEncoding: [sin(pos*freq) | cos(pos*freq)]."""
    pos = jnp.arange(seq_len, dtype=jnp.float32)
    freq = 1.0 / (10000.0 ** (jnp.arange(0, d_model, 2, dtype=jnp.float32)
                              / d_model))
    ang = pos[:, None] * freq[None, :]
    return jnp.concatenate([jnp.sin(ang), jnp.cos(ang)], axis=-1)  # (S, D)


def prepare_params(raw, n_heads, d_head):
    """Rearrange weights to head-major layouts (wrapper side, free in XLA),
    cast GEMM weights to bf16, and pack the 1-D per-layer vectors."""
    L, D, _ = raw["wqkv"].shape
    H, Dh = n_heads, d_head
    Dff = raw["w1"].shape[2]
    bf16 = jnp.bfloat16

    # (L, D, 3*H*Dh) -> (L, H, D, 3*Dh): per-head fused [q|k|v] projection.
    wqkv_h = (raw["wqkv"].reshape(L, D, 3, H, Dh)
              .transpose(0, 3, 1, 2, 4).reshape(L, H, D, 3 * Dh))
    bqkv_h = (raw["bqkv"].reshape(L, 3, H, Dh)
              .transpose(0, 2, 1, 3).reshape(L, H, 1, 3 * Dh))
    wo_h = raw["wo"].reshape(L, H, Dh, D)

    P = max(D, Dff)

    def pad(v):
        return jnp.pad(v, ((0, 0), (0, P - v.shape[1])))

    vec = jnp.stack([pad(raw["bo"]),
                     pad(raw["ln1_g"]), pad(raw["ln1_b"]),
                     pad(raw["b1"]), pad(raw["b2"]),
                     pad(raw["ln2_g"]), pad(raw["ln2_b"]),
                     jnp.zeros((L, P), jnp.float32)], axis=1)       # (L, 8, P)

    return dict(wqkv=wqkv_h.astype(bf16), wo=wo_h.astype(bf16),
                w1=raw["w1"].astype(bf16), w2=raw["w2"].astype(bf16),
                bqkv=bqkv_h.astype(jnp.float32), vec=vec.astype(jnp.float32))


# ---------------------------------------------------------------------------
# Pure-JAX reference (mirrors the PyTorch module, eval mode).
# gemm_dtype=bfloat16 reproduces the kernel's mixed-precision GEMMs.
# ---------------------------------------------------------------------------
def _ln_ref(y, g, b, eps=1e-5):
    mu = jnp.mean(y, axis=-1, keepdims=True)
    var = jnp.mean((y - mu) ** 2, axis=-1, keepdims=True)
    return (y - mu) / jnp.sqrt(var + eps) * g + b


def reference_forward(x, pe, raw, gemm_dtype=jnp.float32):
    def mm(a, b):
        return jnp.dot(a.astype(gemm_dtype), b.astype(gemm_dtype),
                       preferred_element_type=jnp.float32)

    B, S, D = x.shape
    H, Dh = raw["n_heads"], raw["d_head"]
    h = x + pe[None]
    L = raw["wqkv"].shape[0]
    for l in range(L):
        hm = h.reshape(B * S, D)
        qkv = mm(hm, raw["wqkv"][l]) + raw["bqkv"][l]
        qkv = qkv.reshape(B, S, 3, H, Dh)
        q = jnp.transpose(qkv[:, :, 0], (0, 2, 1, 3))      # (B, H, S, Dh)
        k = jnp.transpose(qkv[:, :, 1], (0, 2, 1, 3))
        v = jnp.transpose(qkv[:, :, 2], (0, 2, 1, 3))
        s = jnp.einsum("bhqd,bhkd->bhqk", q.astype(gemm_dtype),
                       k.astype(gemm_dtype),
                       preferred_element_type=jnp.float32) / (Dh ** 0.5)
        p = jax.nn.softmax(s, axis=-1)
        a = jnp.einsum("bhqk,bhkd->bhqd", p.astype(gemm_dtype),
                       v.astype(gemm_dtype), preferred_element_type=jnp.float32)
        a = jnp.transpose(a, (0, 2, 1, 3)).reshape(B * S, H * Dh)
        mha = mm(a, raw["wo"][l]) + raw["bo"][l]
        h1 = _ln_ref(hm + mha, raw["ln1_g"][l], raw["ln1_b"][l])
        ff = jnp.maximum(mm(h1, raw["w1"][l]) + raw["b1"][l], 0.0)
        ff = mm(ff, raw["w2"][l]) + raw["b2"][l]
        h2 = _ln_ref(h1 + ff, raw["ln2_g"][l], raw["ln2_b"][l])
        h = h2.reshape(B, S, D)
    return h


# ---------------------------------------------------------------------------
# Main
# ---------------------------------------------------------------------------
if __name__ == "__main__":
    B, S = 2, 8                       # batch, sequence length
    n_layers, n_heads, d_head = 2, 4, 8
    d_model, d_inner = 32, 64
    HDh = n_heads * d_head

    key = jax.random.PRNGKey(0)
    ks = jax.random.split(key, 12)

    # Synthetic parameters.  (PyTorch nn.Linear stores weight as (out, in);
    # here weights are created directly in the transposed (in, out) GEMM layout.)
    raw = {
        "n_heads": n_heads, "d_head": d_head,
        "wqkv": jax.random.normal(ks[0], (n_layers, d_model, 3 * HDh),
                                  jnp.float32) * 0.1,
        "bqkv": jax.random.normal(ks[1], (n_layers, 3 * HDh), jnp.float32) * 0.01,
        "wo": jax.random.normal(ks[2], (n_layers, HDh, d_model),
                                jnp.float32) * 0.1,
        "bo": jax.random.normal(ks[3], (n_layers, d_model), jnp.float32) * 0.01,
        "ln1_g": 1.0 + jax.random.normal(ks[4], (n_layers, d_model),
                                         jnp.float32) * 0.01,
        "ln1_b": jax.random.normal(ks[5], (n_layers, d_model), jnp.float32) * 0.01,
        "w1": jax.random.normal(ks[6], (n_layers, d_model, d_inner),
                                jnp.float32) * 0.1,
        "b1": jax.random.normal(ks[7], (n_layers, d_inner), jnp.float32) * 0.01,
        "w2": jax.random.normal(ks[8], (n_layers, d_inner, d_model),
                                jnp.float32) * 0.1,
        "b2": jax.random.normal(ks[9], (n_layers, d_model), jnp.float32) * 0.01,
        "ln2_g": 1.0 + jax.random.normal(ks[10], (n_layers, d_model),
                                         jnp.float32) * 0.01,
        "ln2_b": jnp.zeros((n_layers, d_model), jnp.float32),
    }

    x = jax.random.normal(ks[11], (B, S, d_model), jnp.float32)
    pe = positional_encoding(S, d_model)
    params = prepare_params(raw, n_heads, d_head)

    out = transformer_forward(x, pe, params, n_heads=n_heads, d_head=d_head)
    out = jax.block_until_ready(out)
    assert out.shape == (B, S, d_model)

    # Tight check against a reference with the same bf16 GEMM precision, plus a
    # looser sanity check against the pure-f32 PyTorch-equivalent reference.
    ref_mixed = reference_forward(x, pe, raw, gemm_dtype=jnp.bfloat16)
    ref_f32 = reference_forward(x, pe, raw, gemm_dtype=jnp.float32)
    assert jnp.allclose(out, ref_mixed, atol=1e-2, rtol=1e-2), \
        "mismatch vs bf16-GEMM reference"
    assert jnp.allclose(out, ref_f32, atol=6e-2, rtol=6e-2), \
        "mismatch vs f32 reference"

    print("KERNEL_OK")
</pallas_src>

<mosaic_0001>
module attributes {stable_mosaic.version = 11 : i64} {
  func.func @_decoder_stack_kernel(%arg0: i32, %arg1: i32, %arg2: memref<1x8x32xf32, #tpu.memory_space<vmem>>, %arg3: memref<1x4x32x24xbf16, #tpu.memory_space<vmem>>, %arg4: memref<1x4x8x32xbf16, #tpu.memory_space<vmem>>, %arg5: memref<1x32x64xbf16, #tpu.memory_space<vmem>>, %arg6: memref<1x64x32xbf16, #tpu.memory_space<vmem>>, %arg7: memref<1x4x1x24xf32, #tpu.memory_space<vmem>>, %arg8: memref<1x8x64xf32, #tpu.memory_space<vmem>>, %arg9: memref<1x8x32xf32, #tpu.memory_space<vmem>>) attributes {dimension_semantics = [#tpu.dimension_semantics<parallel>, #tpu.dimension_semantics<arbitrary>], iteration_bounds = array<i64: 2, 2>, scalar_prefetch = 0 : i64, scratch_operands = 0 : i64, tpu.core_type = #tpu.core_type<tc>, window_params = [{transform_indices = @transform_0, window_bounds = array<i64: 1, 8, 32>}, {transform_indices = @transform_1, window_bounds = array<i64: 1, 4, 32, 24>}, {transform_indices = @transform_2, window_bounds = array<i64: 1, 4, 8, 32>}, {transform_indices = @transform_3, window_bounds = array<i64: 1, 32, 64>}, {transform_indices = @transform_4, window_bounds = array<i64: 1, 64, 32>}, {transform_indices = @transform_5, window_bounds = array<i64: 1, 4, 1, 24>}, {transform_indices = @transform_6, window_bounds = array<i64: 1, 8, 64>}, {transform_indices = @transform_7, window_bounds = array<i64: 1, 8, 32>}]} {
    %c0_i32 = arith.constant 0 : i32
    %0 = arith.cmpi eq, %arg1, %c0_i32 : i32
    %1 = arith.extui %0 : i1 to i32
    %c0_i32_0 = arith.constant 0 : i32
    %2 = arith.cmpi ne, %1, %c0_i32_0 : i32
    scf.if %2 {
      %c0_47 = arith.constant 0 : index
      %c0_48 = arith.constant 0 : index
      %c0_49 = arith.constant 0 : index
      %111 = vector.load %arg2[%c0_47, %c0_48, %c0_49] : memref<1x8x32xf32, #tpu.memory_space<vmem>>, vector<1x8x32xf32>
      %c0_50 = arith.constant 0 : index
      %c0_51 = arith.constant 0 : index
      %c0_52 = arith.constant 0 : index
      %112 = vector.load %arg9[%c0_50, %c0_51, %c0_52] : memref<1x8x32xf32, #tpu.memory_space<vmem>>, vector<1x8x32xf32>
      tpu.vector_store %arg9[%c0_50, %c0_51, %c0_52], %111 {strides = array<i32>} : memref<1x8x32xf32, #tpu.memory_space<vmem>>, vector<1x8x32xf32>,
    } else {
    }
    %c0 = arith.constant 0 : index
    %c0_1 = arith.constant 0 : index
    %c0_2 = arith.constant 0 : index
    %3 = vector.load %arg9[%c0, %c0_1, %c0_2] : memref<1x8x32xf32, #tpu.memory_space<vmem>>, vector<1x8x32xf32>
    %4 = vector.shape_cast %3 : vector<1x8x32xf32> to vector<8x32xf32>
    %c0_3 = arith.constant 0 : index
    %c0_4 = arith.constant 0 : index
    %c0_5 = arith.constant 0 : index
    %5 = vector.load %arg8[%c0_3, %c0_4, %c0_5] : memref<1x8x64xf32, #tpu.memory_space<vmem>>, vector<1x8x64xf32>
    %6 = vector.shape_cast %5 : vector<1x8x64xf32> to vector<8x64xf32>
    %7 = vector.extract_strided_slice %6 {offsets = [0, 0], sizes = [1, 32], strides = [1, 1]} : vector<8x64xf32> to vector<1x32xf32>
    %8 = vector.extract_strided_slice %6 {offsets = [1, 0], sizes = [1, 32], strides = [1, 1]} : vector<8x64xf32> to vector<1x32xf32>
    %9 = vector.extract_strided_slice %6 {offsets = [2, 0], sizes = [1, 32], strides = [1, 1]} : vector<8x64xf32> to vector<1x32xf32>
    %10 = vector.extract_strided_slice %6 {offsets = [3, 0], sizes = [1, 64], strides = [1, 1]} : vector<8x64xf32> to vector<1x64xf32>
    %11 = vector.extract_strided_slice %6 {offsets = [4, 0], sizes = [1, 32], strides = [1, 1]} : vector<8x64xf32> to vector<1x32xf32>
    %12 = vector.extract_strided_slice %6 {offsets = [5, 0], sizes = [1, 32], strides = [1, 1]} : vector<8x64xf32> to vector<1x32xf32>
    %13 = vector.extract_strided_slice %6 {offsets = [6, 0], sizes = [1, 32], strides = [1, 1]} : vector<8x64xf32> to vector<1x32xf32>
    %14 = arith.truncf %4 : vector<8x32xf32> to vector<8x32xbf16>
    %15 = vector.shape_cast %14 : vector<8x32xbf16> to vector<1x8x32xbf16>
    %16 = vector.shape_cast %15 : vector<1x8x32xbf16> to vector<1x8x32xbf16>
    %17 = vector.broadcast %16 : vector<1x8x32xbf16> to vector<4x8x32xbf16>
    %c0_6 = arith.constant 0 : index
    %c0_7 = arith.constant 0 : index
    %c0_8 = arith.constant 0 : index
    %c0_9 = arith.constant 0 : index
    %18 = vector.load %arg3[%c0_6, %c0_7, %c0_8, %c0_9] : memref<1x4x32x24xbf16, #tpu.memory_space<vmem>>, vector<1x4x32x24xbf16>
    %19 = vector.shape_cast %18 : vector<1x4x32x24xbf16> to vector<4x32x24xbf16>
    "tpu.trace_start"() <{level = 10 : i32, message = "hsd,hdf->hsf"}> : () -> ()
    %cst = arith.constant dense<0.000000e+00> : vector<4x8x24xf32>
    %20 = tpu.matmul %17, %19, %cst {dimension_numbers = #tpu.dot_dimension_numbers<[2], [1], [1], [2], [0, 0, 0, 1, 1, 2], [0], [0]>} : vector<4x8x32xbf16>, vector<4x32x24xbf16>, vector<4x8x24xf32> -> vector<4x8x24xf32>
    "tpu.trace_stop"() : () -> ()
    %c0_10 = arith.constant 0 : index
    %c0_11 = arith.constant 0 : index
    %c0_12 = arith.constant 0 : index
    %c0_13 = arith.constant 0 : index
    %21 = vector.load %arg7[%c0_10, %c0_11, %c0_12, %c0_13] : memref<1x4x1x24xf32, #tpu.memory_space<vmem>>, vector<1x4x1x24xf32>
    %22 = vector.shape_cast %21 : vector<1x4x1x24xf32> to vector<4x1x24xf32>
    %23 = vector.broadcast %22 : vector<4x1x24xf32> to vector<4x8x24xf32>
    %24 = arith.addf %20, %23 : vector<4x8x24xf32>
    %25 = vector.extract_strided_slice %24 {offsets = [0, 0, 0], sizes = [4, 8, 8], strides = [1, 1, 1]} : vector<4x8x24xf32> to vector<4x8x8xf32>
    %26 = arith.truncf %25 : vector<4x8x8xf32> to vector<4x8x8xbf16>
    %27 = vector.extract_strided_slice %24 {offsets = [0, 0, 8], sizes = [4, 8, 8], strides = [1, 1, 1]} : vector<4x8x24xf32> to vector<4x8x8xf32>
    %28 = arith.truncf %27 : vector<4x8x8xf32> to vector<4x8x8xbf16>
    %29 = vector.extract_strided_slice %24 {offsets = [0, 0, 16], sizes = [4, 8, 8], strides = [1, 1, 1]} : vector<4x8x24xf32> to vector<4x8x8xf32>
    %30 = arith.truncf %29 : vector<4x8x8xf32> to vector<4x8x8xbf16>
    "tpu.trace_start"() <{level = 10 : i32, message = "hqd,hkd->hqk"}> : () -> ()
    %cst_14 = arith.constant dense<0.000000e+00> : vector<4x8x8xf32>
    %31 = tpu.matmul %26, %28, %cst_14 {dimension_numbers = #tpu.dot_dimension_numbers<[2], [2], [1], [1], [0, 0, 0, 1, 1, 1], [0], [0]>} : vector<4x8x8xbf16>, vector<4x8x8xbf16>, vector<4x8x8xf32> -> vector<4x8x8xf32>
    "tpu.trace_stop"() : () -> ()
    %cst_15 = arith.constant 0.353553385 : f32
    %32 = vector.broadcast %cst_15 : f32 to vector<4x8x8xf32>
    %33 = arith.mulf %31, %32 : vector<4x8x8xf32>
    %cst_16 = arith.constant dense<0xFF800000> : vector<4x8xf32>
    %34 = vector.multi_reduction <maximumf>, %33, %cst_16 [2] : vector<4x8x8xf32> to vector<4x8xf32>
    %35 = vector.shape_cast %34 : vector<4x8xf32> to vector<4x8x1xf32>
    %36 = vector.broadcast %35 : vector<4x8x1xf32> to vector<4x8x8xf32>
    %37 = arith.subf %33, %36 : vector<4x8x8xf32>
    %38 = math.exp %37 : vector<4x8x8xf32>
    %cst_17 = arith.constant dense<0.000000e+00> : vector<4x8xf32>
    %39 = vector.multi_reduction <add>, %38, %cst_17 [2] : vector<4x8x8xf32> to vector<4x8xf32>
    %40 = vector.shape_cast %39 : vector<4x8xf32> to vector<4x8x1xf32>
    %41 = tpu.reciprocal %40 {approx = true} : vector<4x8x1xf32> -> vector<4x8x1xf32>
    %42 = vector.broadcast %41 : vector<4x8x1xf32> to vector<4x8x8xf32>
    %43 = arith.mulf %38, %42 : vector<4x8x8xf32>
    %44 = arith.truncf %43 : vector<4x8x8xf32> to vector<4x8x8xbf16>
    "tpu.trace_start"() <{level = 10 : i32, message = "hqk,hkd->hqd"}> : () -> ()
    %cst_18 = arith.constant dense<0.000000e+00> : vector<4x8x8xf32>
    %45 = tpu.matmul %44, %30, %cst_18 {dimension_numbers = #tpu.dot_dimension_numbers<[2], [1], [1], [2], [0, 0, 0, 1, 1, 2], [0], [0]>} : vector<4x8x8xbf16>, vector<4x8x8xbf16>, vector<4x8x8xf32> -> vector<4x8x8xf32>
    "tpu.trace_stop"() : () -> ()
    %46 = arith.truncf %45 : vector<4x8x8xf32> to vector<4x8x8xbf16>
    %c0_19 = arith.constant 0 : index
    %c0_20 = arith.constant 0 : index
    %c0_21 = arith.constant 0 : index
    %c0_22 = arith.constant 0 : index
    %47 = vector.load %arg4[%c0_19, %c0_20, %c0_21, %c0_22] : memref<1x4x8x32xbf16, #tpu.memory_space<vmem>>, vector<1x4x8x32xbf16>
    %48 = vector.shape_cast %47 : vector<1x4x8x32xbf16> to vector<4x8x32xbf16>
    "tpu.trace_start"() <{level = 10 : i32, message = "hqd,hde->hqe"}> : () -> ()
    %cst_23 = arith.constant dense<0.000000e+00> : vector<4x8x32xf32>
    %49 = tpu.matmul %46, %48, %cst_23 {dimension_numbers = #tpu.dot_dimension_numbers<[2], [1], [1], [2], [0, 0, 0, 1, 1, 2], [0], [0]>} : vector<4x8x8xbf16>, vector<4x8x32xbf16>, vector<4x8x32xf32> -> vector<4x8x32xf32>
    "tpu.trace_stop"() : () -> ()
    %cst_24 = arith.constant dense<0.000000e+00> : vector<8x32xf32>
    %50 = vector.multi_reduction <add>, %49, %cst_24 [0] : vector<4x8x32xf32> to vector<8x32xf32>
    %51 = vector.broadcast %7 : vector<1x32xf32> to vector<8x32xf32>
    %52 = arith.addf %50, %51 : vector<8x32xf32>
    %53 = arith.addf %4, %52 : vector<8x32xf32>
    %cst_25 = arith.constant dense<0.000000e+00> : vector<8xf32>
    %54 = vector.multi_reduction <add>, %53, %cst_25 [1] : vector<8x32xf32> to vector<8xf32>
    %55 = vector.shape_cast %54 : vector<8xf32> to vector<8x1xf32>
    %cst_26 = arith.constant 3.200000e+01 : f32
    %56 = vector.broadcast %cst_26 : f32 to vector<8x1xf32>
    %57 = arith.divf %55, %56 : vector<8x1xf32>
    %58 = vector.broadcast %57 : vector<8x1xf32> to vector<8x32xf32>
    %59 = arith.subf %53, %58 : vector<8x32xf32>
    %60 = arith.mulf %59, %59 : vector<8x32xf32>
    %cst_27 = arith.constant dense<0.000000e+00> : vector<8xf32>
    %61 = vector.multi_reduction <add>, %60, %cst_27 [1] : vector<8x32xf32> to vector<8xf32>
    %62 = vector.shape_cast %61 : vector<8xf32> to vector<8x1xf32>
    %cst_28 = arith.constant 3.200000e+01 : f32
    %63 = vector.broadcast %cst_28 : f32 to vector<8x1xf32>
    %64 = arith.divf %62, %63 : vector<8x1xf32>
    %cst_29 = arith.constant 9.99999974E-6 : f32
    %65 = vector.broadcast %cst_29 : f32 to vector<8x1xf32>
    %66 = arith.addf %64, %65 : vector<8x1xf32>
    %67 = math.rsqrt %66 : vector<8x1xf32>
    %68 = vector.broadcast %67 : vector<8x1xf32> to vector<8x32xf32>
    %69 = arith.mulf %59, %68 : vector<8x32xf32>
    %70 = vector.broadcast %8 : vector<1x32xf32> to vector<8x32xf32>
    %71 = arith.mulf %69, %70 : vector<8x32xf32>
    %72 = vector.broadcast %9 : vector<1x32xf32> to vector<8x32xf32>
    %73 = arith.addf %71, %72 : vector<8x32xf32>
    %74 = arith.truncf %73 : vector<8x32xf32> to vector<8x32xbf16>
    %c0_30 = arith.constant 0 : index
    %c0_31 = arith.constant 0 : index
    %c0_32 = arith.constant 0 : index
    %75 = vector.load %arg5[%c0_30, %c0_31, %c0_32] : memref<1x32x64xbf16, #tpu.memory_space<vmem>>, vector<1x32x64xbf16>
    %76 = vector.shape_cast %75 : vector<1x32x64xbf16> to vector<32x64xbf16>
    %cst_33 = arith.constant dense<0.000000e+00> : vector<8x64xf32>
    %77 = tpu.matmul %74, %76, %cst_33 {dimension_numbers = #tpu.dot_dimension_numbers<[1], [0], [0], [1], [0, 0, 1, 1], [], []>} : vector<8x32xbf16>, vector<32x64xbf16>, vector<8x64xf32> -> vector<8x64xf32>
    %78 = vector.broadcast %10 : vector<1x64xf32> to vector<8x64xf32>
    %79 = arith.addf %77, %78 : vector<8x64xf32>
    %cst_34 = arith.constant 0.000000e+00 : f32
    %80 = vector.broadcast %cst_34 : f32 to vector<8x64xf32>
    %81 = arith.maximumf %79, %80 : vector<8x64xf32>
    %82 = arith.truncf %81 : vector<8x64xf32> to vector<8x64xbf16>
    %c0_35 = arith.constant 0 : index
    %c0_36 = arith.constant 0 : index
    %c0_37 = arith.constant 0 : index
    %83 = vector.load %arg6[%c0_35, %c0_36, %c0_37] : memref<1x64x32xbf16, #tpu.memory_space<vmem>>, vector<1x64x32xbf16>
    %84 = vector.shape_cast %83 : vector<1x64x32xbf16> to vector<64x32xbf16>
    %cst_38 = arith.constant dense<0.000000e+00> : vector<8x32xf32>
    %85 = tpu.matmul %82, %84, %cst_38 {dimension_numbers = #tpu.dot_dimension_numbers<[1], [0], [0], [1], [0, 0, 1, 1], [], []>} : vector<8x64xbf16>, vector<64x32xbf16>, vector<8x32xf32> -> vector<8x32xf32>
    %86 = vector.broadcast %11 : vector<1x32xf32> to vector<8x32xf32>
    %87 = arith.addf %85, %86 : vector<8x32xf32>
    %88 = arith.addf %73, %87 : vector<8x32xf32>
    %cst_39 = arith.constant dense<0.000000e+00> : vector<8xf32>
    %89 = vector.multi_reduction <add>, %88, %cst_39 [1] : vector<8x32xf32> to vector<8xf32>
    %90 = vector.shape_cast %89 : vector<8xf32> to vector<8x1xf32>
    %cst_40 = arith.constant 3.200000e+01 : f32
    %91 = vector.broadcast %cst_40 : f32 to vector<8x1xf32>
    %92 = arith.divf %90, %91 : vector<8x1xf32>
    %93 = vector.broadcast %92 : vector<8x1xf32> to vector<8x32xf32>
    %94 = arith.subf %88, %93 : vector<8x32xf32>
    %95 = arith.mulf %94, %94 : vector<8x32xf32>
    %cst_41 = arith.constant dense<0.000000e+00> : vector<8xf32>
    %96 = vector.multi_reduction <add>, %95, %cst_41 [1] : vector<8x32xf32> to vector<8xf32>
    %97 = vector.shape_cast %96 : vector<8xf32> to vector<8x1xf32>
    %cst_42 = arith.constant 3.200000e+01 : f32
    %98 = vector.broadcast %cst_42 : f32 to vector<8x1xf32>
    %99 = arith.divf %97, %98 : vector<8x1xf32>
    %cst_43 = arith.constant 9.99999974E-6 : f32
    %100 = vector.broadcast %cst_43 : f32 to vector<8x1xf32>
    %101 = arith.addf %99, %100 : vector<8x1xf32>
    %102 = math.rsqrt %101 : vector<8x1xf32>
    %103 = vector.broadcast %102 : vector<8x1xf32> to vector<8x32xf32>
    %104 = arith.mulf %94, %103 : vector<8x32xf32>
    %105 = vector.broadcast %12 : vector<1x32xf32> to vector<8x32xf32>
    %106 = arith.mulf %104, %105 : vector<8x32xf32>
    %107 = vector.broadcast %13 : vector<1x32xf32> to vector<8x32xf32>
    %108 = arith.addf %106, %107 : vector<8x32xf32>
    %109 = vector.shape_cast %108 : vector<8x32xf32> to vector<1x8x32xf32>
    %c0_44 = arith.constant 0 : index
    %c0_45 = arith.constant 0 : index
    %c0_46 = arith.constant 0 : index
    %110 = vector.load %arg9[%c0_44, %c0_45, %c0_46] : memref<1x8x32xf32, #tpu.memory_space<vmem>>, vector<1x8x32xf32>
    tpu.vector_store %arg9[%c0_44, %c0_45, %c0_46], %109 {strides = array<i32>} : memref<1x8x32xf32, #tpu.memory_space<vmem>>, vector<1x8x32xf32>,
    return
  }
  func.func @transform_0(%arg0: i32, %arg1: i32) -> (i32, i32, i32) {
    %c0_i32 = arith.constant 0 : i32
    %c0_i32_0 = arith.constant 0 : i32
    %c0_i32_1 = arith.constant 0 : i32
    return %arg0, %c0_i32, %c0_i32_0 : i32, i32, i32
  }
  func.func @transform_1(%arg0: i32, %arg1: i32) -> (i32, i32, i32, i32) {
    %c0_i32 = arith.constant 0 : i32
    %c0_i32_0 = arith.constant 0 : i32
    %c0_i32_1 = arith.constant 0 : i32
    %c0_i32_2 = arith.constant 0 : i32
    return %arg1, %c0_i32, %c0_i32_0, %c0_i32_1 : i32, i32, i32, i32
  }
  func.func @transform_2(%arg0: i32, %arg1: i32) -> (i32, i32, i32, i32) {
    %c0_i32 = arith.constant 0 : i32
    %c0_i32_0 = arith.constant 0 : i32
    %c0_i32_1 = arith.constant 0 : i32
    %c0_i32_2 = arith.constant 0 : i32
    return %arg1, %c0_i32, %c0_i32_0, %c0_i32_1 : i32, i32, i32, i32
  }
  func.func @transform_3(%arg0: i32, %arg1: i32) -> (i32, i32, i32) {
    %c0_i32 = arith.constant 0 : i32
    %c0_i32_0 = arith.constant 0 : i32
    %c0_i32_1 = arith.constant 0 : i32
    return %arg1, %c0_i32, %c0_i32_0 : i32, i32, i32
  }
  func.func @transform_4(%arg0: i32, %arg1: i32) -> (i32, i32, i32) {
    %c0_i32 = arith.constant 0 : i32
    %c0_i32_0 = arith.constant 0 : i32
    %c0_i32_1 = arith.constant 0 : i32
    return %arg1, %c0_i32, %c0_i32_0 : i32, i32, i32
  }
  func.func @transform_5(%arg0: i32, %arg1: i32) -> (i32, i32, i32, i32) {
    %c0_i32 = arith.constant 0 : i32
    %c0_i32_0 = arith.constant 0 : i32
    %c0_i32_1 = arith.constant 0 : i32
    %c0_i32_2 = arith.constant 0 : i32
    return %arg1, %c0_i32, %c0_i32_0, %c0_i32_1 : i32, i32, i32, i32
  }
  func.func @transform_6(%arg0: i32, %arg1: i32) -> (i32, i32, i32) {
    %c0_i32 = arith.constant 0 : i32
    %c0_i32_0 = arith.constant 0 : i32
    %c0_i32_1 = arith.constant 0 : i32
    return %arg1, %c0_i32, %c0_i32_0 : i32, i32, i32
  }
  func.func @transform_7(%arg0: i32, %arg1: i32) -> (i32, i32, i32) {
    %c0_i32 = arith.constant 0 : i32
    %c0_i32_0 = arith.constant 0 : i32
    %c0_i32_1 = arith.constant 0 : i32
    return %arg0, %c0_i32, %c0_i32_0 : i32, i32, i32
  }
}

</mosaic_0001>

<llo_original>
// kernel: transformer_forward.1
$region0: #{transformer_forward.1}
  #allocation0 [shape = 'u32[]', space=smem, size = 0x4, offset = 0x4, fixed_abs, tag = 'smem constant byte address 0x4 - core index']
  #allocation1 [shape = 'u32[144,128]{1,0:T(1,128)}', space=vmem, size = 0x12000, scoped, tag = 'internal scratch']
  %s0 = inlined_call_operand.hbm [shape: f32[2,8,32], index: 0, kind: input, shape index: {}, may-alias: {0,7}]
  %s1 = inlined_call_operand.vmem [shape: bf16[2,4,32,24], index: 1, kind: input, shape index: {}]
  %s2 = inlined_call_operand.vmem [shape: bf16[2,4,8,32], index: 2, kind: input, shape index: {}]
  %s3 = inlined_call_operand.vmem [shape: bf16[2,32,64], index: 3, kind: input, shape index: {}]
  %s4 = inlined_call_operand.vmem [shape: bf16[2,64,32], index: 4, kind: input, shape index: {}]
  %s5 = inlined_call_operand.vmem [shape: f32[2,4,1,24], index: 5, kind: input, shape index: {}]
  %s6 = inlined_call_operand.vmem [shape: f32[2,8,64], index: 6, kind: input, shape index: {}]
  %s7 = inlined_call_operand.hbm [shape: f32[2,8,32], index: 7, kind: output, shape index: {}, may-alias: {0,7}]
  %s8 = sld [smem:[#allocation0]]
  $region69: #{transformer_forward.1} parent=0
    _
  %s10 = ssub.s32 1, %s8
  %s11 = scalar_select 0, %s10, %s8
  $region1: #{transformer_forward.1} parent=0
    #allocation2 [shape = 'u8[8192]{0}', space=vmem, size = 0x2000, scoped, tag = 'input window, operand 0']
    #allocation3 [shape = 's32[2]{0}', space=sflag, size = 0x8, scoped, tag = 'scoped memory for transformer_forward.1']
    #allocation4 [shape = 's32[2]{0}', space=sflag, size = 0x8, scoped, tag = 'scoped memory for transformer_forward.1']
    #allocation5 [shape = 'u8[8192]{0}', space=vmem, size = 0x2000, scoped, tag = 'output window, operand 0']
    %12 = vsyncpa [#allocation3], 0
    %s13 = scalar_lea.sflag [#allocation3], 1
    %14 = vsyncpa %s13, 0
    %15 = vsyncpa [#allocation4], 0
    %s16 = scalar_lea.sflag [#allocation4], 1
    %17 = vsyncpa %s16, 0
    loop: start=0, step=1, limit=6
    $region2: #{transformer_forward.1} parent=1 // loop_pre_header
      _
    $region3: #{transformer_forward.1} parent=1 // loop_header
      %s19 = sphi 0, %s23
      %p20 = scmp.ge.s32.totalorder %s19, 6
      %s26 = sphi 0, %s38
      %s27 = sphi 0, %s34
      %s28 = sphi 0, %s26
      %s29 = sphi 0, %s27
      %s30 = sphi 0, %s28
      %s31 = sphi 0, %s29
      %s41 = sphi 0, %s43
      %s44 = sphi 0, %s41
      %s45 = sphi 0, %s44
      %s61 = sphi 0, %s45
      %s67 = sphi 0, %s69
      %s70 = sphi 0, %s67
      %s71 = sphi 0, %s70
      %s87 = sphi 0, %s71
      %s93 = sphi 0, %s95
      %s96 = sphi 0, %s93
      %s97 = sphi 0, %s96
      %s113 = sphi 0, %s97
      %s119 = sphi 0, %s121
      %s122 = sphi 0, %s119
      %s123 = sphi 0, %s122
      %s139 = sphi 0, %s123
      %s145 = sphi 0, %s147
      %s148 = sphi 0, %s145
      %s149 = sphi 0, %s148
      %s165 = sphi 0, %s149
      %s171 = sphi 0, %s173
      %s174 = sphi 0, %s171
      %s175 = sphi 0, %s174
      %s191 = sphi 0, %s175
      %s197 = sphi 0, %s199
      %s200 = sphi 0, %s197
      %s201 = sphi 0, %s200
      %s217 = sphi 0, %s201
      %s223 = sphi 0, %s225
      %s226 = sphi 0, %s223
      %s227 = sphi 0, %s226
      %s243 = sphi 0, %s227
    $region4: #{transformer_forward.1} parent=1 // loop_header_branch
      %22 = sbr.rel (%p20) target = $region8
    $region5: #{transformer_forward.1} parent=1 // loop_body
      %s24 = ssub.s32 %s19, 1
      %s25 = ssub.s32 %s19, 2
      %s32 = sadd.s32 1, %s27
      %p33 = scmp.ge.s32.totalorder %s32, 2
      %s34 = scalar_select %p33, 0, %s32
      %s35 = sadd.s32 1, %s26
      %s36 = scalar_select %p33, %s35, %s26
      %p37 = scmp.ge.s32.totalorder %s36, 2
      %s38 = scalar_select %p37, 0, %s36
      %s39 = ssub.s32 %s26, %s38
      %p40 = scmp.eq.s32.totalorder %s39, 0
      %s42 = sadd.s32 %s41, 1
      %s43 = scalar_select %p40, %s41, %s42
      %p46 = pneg %p40
      %p47 = scmp.eq.s32.totalorder %s19, 3
      %p48 = por %p46, %p47
      %p49 = scmp.ne.s32.totalorder %s41, %s44
      %p50 = scmp.eq.s32.totalorder %s19, 0
      %p51 = por %p49, %p50
      %p52 = scmp.ne.s32.totalorder %s41, %s44
      %p53 = scmp.eq.s32.totalorder %s24, 3
      %p54 = por %p52, %p53
      %p55 = scmp.ne.s32.totalorder %s44, %s45
      %p56 = scmp.eq.s32.totalorder %s24, 0
      %p57 = por %p55, %p56
      %p58 = scmp.ne.s32.totalorder %s44, %s45
      %p59 = scmp.eq.s32.totalorder %s25, 3
      %p60 = por %p58, %p59
      %p62 = scmp.ne.s32.totalorder %s45, %s61
      %p63 = scmp.eq.s32.totalorder %s25, 0
      %p64 = por %p62, %p63
      %s65 = ssub.s32 %s27, %s34
      %p66 = scmp.eq.s32.totalorder %s65, 0
      %s68 = sadd.s32 %s67, 1
      %s69 = scalar_select %p66, %s67, %s68
      %p72 = pneg %p66
      %p73 = scmp.eq.s32.totalorder %s19, 3
      %p74 = por %p72, %p73
      %p75 = scmp.ne.s32.totalorder %s67, %s70
      %p76 = scmp.eq.s32.totalorder %s19, 0
      %p77 = por %p75, %p76
      %p78 = scmp.ne.s32.totalorder %s67, %s70
      %p79 = scmp.eq.s32.totalorder %s24, 3
      %p80 = por %p78, %p79
      %p81 = scmp.ne.s32.totalorder %s70, %s71
      %p82 = scmp.eq.s32.totalorder %s24, 0
      %p83 = por %p81, %p82
      %p84 = scmp.ne.s32.totalorder %s70, %s71
      %p85 = scmp.eq.s32.totalorder %s25, 3
      %p86 = por %p84, %p85
      %p88 = scmp.ne.s32.totalorder %s71, %s87
      %p89 = scmp.eq.s32.totalorder %s25, 0
      %p90 = por %p88, %p89
      %s91 = ssub.s32 %s27, %s34
      %p92 = scmp.eq.s32.totalorder %s91, 0
      %s94 = sadd.s32 %s93, 1
      %s95 = scalar_select %p92, %s93, %s94
      %p98 = pneg %p92
      %p99 = scmp.eq.s32.totalorder %s19, 3
      %p100 = por %p98, %p99
      %p101 = scmp.ne.s32.totalorder %s93, %s96
      %p102 = scmp.eq.s32.totalorder %s19, 0
      %p103 = por %p101, %p102
      %p104 = scmp.ne.s32.totalorder %s93, %s96
      %p105 = scmp.eq.s32.totalorder %s24, 3
      %p106 = por %p104, %p105
      %p107 = scmp.ne.s32.totalorder %s96, %s97
      %p108 = scmp.eq.s32.totalorder %s24, 0
      %p109 = por %p107, %p108
      %p110 = scmp.ne.s32.totalorder %s96, %s97
      %p111 = scmp.eq.s32.totalorder %s25, 3
      %p112 = por %p110, %p111
      %p114 = scmp.ne.s32.totalorder %s97, %s113
      %p115 = scmp.eq.s32.totalorder %s25, 0
      %p116 = por %p114, %p115
      %s117 = ssub.s32 %s27, %s34
      %p118 = scmp.eq.s32.totalorder %s117, 0
      %s120 = sadd.s32 %s119, 1
      %s121 = scalar_select %p118, %s119, %s120
      %p124 = pneg %p118
      %p125 = scmp.eq.s32.totalorder %s19, 3
      %p126 = por %p124, %p125
      %p127 = scmp.ne.s32.totalorder %s119, %s122
      %p128 = scmp.eq.s32.totalorder %s19, 0
      %p129 = por %p127, %p128
      %p130 = scmp.ne.s32.totalorder %s119, %s122
      %p131 = scmp.eq.s32.totalorder %s24, 3
      %p132 = por %p130, %p131
      %p133 = scmp.ne.s32.totalorder %s122, %s123
      %p134 = scmp.eq.s32.totalorder %s24, 0
      %p135 = por %p133, %p134
      %p136 = scmp.ne.s32.totalorder %s122, %s123
      %p137 = scmp.eq.s32.totalorder %s25, 3
      %p138 = por %p136, %p137
      %p140 = scmp.ne.s32.totalorder %s123, %s139
      %p141 = scmp.eq.s32.totalorder %s25, 0
      %p142 = por %p140, %p141
      %s143 = ssub.s32 %s27, %s34
      %p144 = scmp.eq.s32.totalorder %s143, 0
      %s146 = sadd.s32 %s145, 1
      %s147 = scalar_select %p144, %s145, %s146
      %p150 = pneg %p144
      %p151 = scmp.eq.s32.totalorder %s19, 3
      %p152 = por %p150, %p151
      %p153 = scmp.ne.s32.totalorder %s145, %s148
      %p154 = scmp.eq.s32.totalorder %s19, 0
      %p155 = por %p153, %p154
      %p156 = scmp.ne.s32.totalorder %s145, %s148
      %p157 = scmp.eq.s32.totalorder %s24, 3
      %p158 = por %p156, %p157
      %p159 = scmp.ne.s32.totalorder %s148, %s149
      %p160 = scmp.eq.s32.totalorder %s24, 0
      %p161 = por %p159, %p160
      %p162 = scmp.ne.s32.totalorder %s148, %s149
      %p163 = scmp.eq.s32.totalorder %s25, 3
      %p164 = por %p162, %p163
      %p166 = scmp.ne.s32.totalorder %s149, %s165
      %p167 = scmp.eq.s32.totalorder %s25, 0
      %p168 = por %p166, %p167
      %s169 = ssub.s32 %s27, %s34
      %p170 = scmp.eq.s32.totalorder %s169, 0
      %s172 = sadd.s32 %s171, 1
      %s173 = scalar_select %p170, %s171, %s172
      %p176 = pneg %p170
      %p177 = scmp.eq.s32.totalorder %s19, 3
      %p178 = por %p176, %p177
      %p179 = scmp.ne.s32.totalorder %s171, %s174
      %p180 = scmp.eq.s32.totalorder %s19, 0
      %p181 = por %p179, %p180
      %p182 = scmp.ne.s32.totalorder %s171, %s174
      %p183 = scmp.eq.s32.totalorder %s24, 3
      %p184 = por %p182, %p183
      %p185 = scmp.ne.s32.totalorder %s174, %s175
      %p186 = scmp.eq.s32.totalorder %s24, 0
      %p187 = por %p185, %p186
      %p188 = scmp.ne.s32.totalorder %s174, %s175
      %p189 = scmp.eq.s32.totalorder %s25, 3
      %p190 = por %p188, %p189
      %p192 = scmp.ne.s32.totalorder %s175, %s191
      %p193 = scmp.eq.s32.totalorder %s25, 0
      %p194 = por %p192, %p193
      %s195 = ssub.s32 %s27, %s34
      %p196 = scmp.eq.s32.totalorder %s195, 0
      %s198 = sadd.s32 %s197, 1
      %s199 = scalar_select %p196, %s197, %s198
      %p202 = pneg %p196
      %p203 = scmp.eq.s32.totalorder %s19, 3
      %p204 = por %p202, %p203
      %p205 = scmp.ne.s32.totalorder %s197, %s200
      %p206 = scmp.eq.s32.totalorder %s19, 0
      %p207 = por %p205, %p206
      %p208 = scmp.ne.s32.totalorder %s197, %s200
      %p209 = scmp.eq.s32.totalorder %s24, 3
      %p210 = por %p208, %p209
      %p211 = scmp.ne.s32.totalorder %s200, %s201
      %p212 = scmp.eq.s32.totalorder %s24, 0
      %p213 = por %p211, %p212
      %p214 = scmp.ne.s32.totalorder %s200, %s201
      %p215 = scmp.eq.s32.totalorder %s25, 3
      %p216 = por %p214, %p215
      %p218 = scmp.ne.s32.totalorder %s201, %s217
      %p219 = scmp.eq.s32.totalorder %s25, 0
      %p220 = por %p218, %p219
      %s221 = ssub.s32 %s26, %s38
      %p222 = scmp.eq.s32.totalorder %s221, 0
      %s224 = sadd.s32 %s223, 1
      %s225 = scalar_select %p222, %s223, %s224
      %p228 = pneg %p222
      %p229 = scmp.eq.s32.totalorder %s19, 3
      %p230 = por %p228, %p229
      %p231 = scmp.ne.s32.totalorder %s223, %s226
      %p232 = scmp.eq.s32.totalorder %s19, 0
      %p233 = por %p231, %p232
      %p234 = scmp.ne.s32.totalorder %s223, %s226
      %p235 = scmp.eq.s32.totalorder %s24, 3
      %p236 = por %p234, %p235
      %p237 = scmp.ne.s32.totalorder %s226, %s227
      %p238 = scmp.eq.s32.totalorder %s24, 0
      %p239 = por %p237, %p238
      %p240 = scmp.ne.s32.totalorder %s226, %s227
      %p241 = scmp.eq.s32.totalorder %s25, 3
      %p242 = por %p240, %p241
      %p244 = scmp.ne.s32.totalorder %s227, %s243
      %p245 = scmp.eq.s32.totalorder %s25, 0
      %p246 = por %p244, %p245
      %p247 = scmp.le.s32.totalorder 1, %s19
      %p248 = scmp.lt.s32.totalorder %s19, 5
      %p249 = pnand %p247, %p248
      %p250 = pneg %p249
      // Predicated region
      $region9: #{transformer_forward.1} parent=5 // pred_check
        _
      $region10: #{transformer_forward.1} parent=5 // pred_check_branch
        %252 = sbr.rel (%p249) target = $region12
      $region11: #{transformer_forward.1} parent=5 // pred_region
        %s253 = ssub.s32 %s19, 1
      $region12: #{transformer_forward.1} parent=5 // pred_fallthru
        _
      %p254 = scmp.lt.s32.totalorder %s19, 4
      // Predicated region
      $region13: #{transformer_forward.1} parent=5 // pred_check
        %p255 = pneg %p254
      $region14: #{transformer_forward.1} parent=5 // pred_check_branch
        %257 = sbr.rel (%p255) target = $region16
      $region15: #{transformer_forward.1} parent=5 // pred_region
        // Predicated region
        $region17: #{transformer_forward.1} parent=15 // pred_check
          %p258 = pneg %p51
        $region18: #{transformer_forward.1} parent=15 // pred_check_branch
          %260 = sbr.rel (%p258) target = $region20
        $region19: #{transformer_forward.1} parent=15 // pred_region
          %s261 = sand.u32 %s41, 1
          %s262 = scalar_lea.sflag [#allocation3], %s261
          %s263 = sand.u32 %s41, 1
          %s264 = smul.addr %s263, 8
          %s265 = scalar_lea.vmem [#allocation2], %s264
          %s267 = ssub.s32 128, 128
          %268 = vsyncadd %s262, %s267
          %s269 = smul.addr %s26, 128
          %s270 = scalar_lea.hbm %s0, %s269
          %s272 = sshll.u32 %s265, 4
          %s273 = int_to_ptr.vmem [resolvable:$true] %s272
          %275 = dma.hbm_to_vmem [thread:$0]  %s270, 128, %s273, %s262
        $region20: #{transformer_forward.1} parent=15 // pred_fallthru
          _
        // Predicated region
        $region21: #{transformer_forward.1} parent=15 // pred_check
          %p276 = pneg %p77
        $region22: #{transformer_forward.1} parent=15 // pred_check_branch
          %278 = sbr.rel (%p276) target = $region24
        $region23: #{transformer_forward.1} parent=15 // pred_region
          %p279 = scmp.lt.s32.totalorder %s27, 1
          %s280 = scalar_select %p279, %s27, 1
          %s281 = smul.addr %s280, 16
          %s282 = smul.addr %s281, 4
          %s283 = scalar_lea.vmem %s1, %s282
        $region24: #{transformer_forward.1} parent=15 // pred_fallthru
          _
        // Predicated region
        $region25: #{transformer_forward.1} parent=15 // pred_check
          %p284 = pneg %p103
        $region26: #{transformer_forward.1} parent=15 // pred_check_branch
          %286 = sbr.rel (%p284) target = $region28
        $region27: #{transformer_forward.1} parent=15 // pred_region
          %p287 = scmp.lt.s32.totalorder %s27, 1
          %s288 = scalar_select %p287, %s27, 1
          %s289 = smul.addr %s288, 4
          %s290 = smul.addr %s289, 4
          %s291 = scalar_lea.vmem %s2, %s290
        $region28: #{transformer_forward.1} parent=15 // pred_fallthru
          _
        // Predicated region
        $region29: #{transformer_forward.1} parent=15 // pred_check
          %p292 = pneg %p129
        $region30: #{transformer_forward.1} parent=15 // pred_check_branch
          %294 = sbr.rel (%p292) target = $region32
        $region31: #{transformer_forward.1} parent=15 // pred_region
          %p295 = scmp.lt.s32.totalorder %s27, 1
          %s296 = scalar_select %p295, %s27, 1
          %s297 = smul.addr %s296, 4
          %s298 = smul.addr %s297, 4
          %s299 = scalar_lea.vmem %s3, %s298
        $region32: #{transformer_forward.1} parent=15 // pred_fallthru
          _
        // Predicated region
        $region33: #{transformer_forward.1} parent=15 // pred_check
          %p300 = pneg %p155
        $region34: #{transformer_forward.1} parent=15 // pred_check_branch
          %302 = sbr.rel (%p300) target = $region36
        $region35: #{transformer_forward.1} parent=15 // pred_region
          %p303 = scmp.lt.s32.totalorder %s27, 1
          %s304 = scalar_select %p303, %s27, 1
          %s305 = smul.addr %s304, 8
          %s306 = smul.addr %s305, 4
          %s307 = scalar_lea.vmem %s4, %s306
        $region36: #{transformer_forward.1} parent=15 // pred_fallthru
          _
        // Predicated region
        $region37: #{transformer_forward.1} parent=15 // pred_check
          %p308 = pneg %p181
        $region38: #{transformer_forward.1} parent=15 // pred_check_branch
          %310 = sbr.rel (%p308) target = $region40
        $region39: #{transformer_forward.1} parent=15 // pred_region
          %p311 = scmp.lt.s32.totalorder %s27, 1
          %s312 = scalar_select %p311, %s27, 1
          %s313 = smul.addr %s312, 4
          %s314 = scalar_lea.vmem %s5, %s313
        $region40: #{transformer_forward.1} parent=15 // pred_fallthru
          _
        // Predicated region
        $region41: #{transformer_forward.1} parent=15 // pred_check
          %p315 = pneg %p207
        $region42: #{transformer_forward.1} parent=15 // pred_check_branch
          %317 = sbr.rel (%p315) target = $region44
        $region43: #{transformer_forward.1} parent=15 // pred_region
          %p318 = scmp.lt.s32.totalorder %s27, 1
          %s319 = scalar_select %p318, %s27, 1
          %s320 = smul.addr %s319, 8
          %s321 = scalar_lea.vmem %s6, %s320
        $region44: #{transformer_forward.1} parent=15 // pred_fallthru
          _
      $region16: #{transformer_forward.1} parent=5 // pred_fallthru
        _
      %p322 = scmp.le.s32.totalorder 1, %s19
      %p323 = scmp.lt.s32.totalorder %s19, 5
      %p324 = pnand %p322, %p323
      %p325 = pneg %p324
      // Predicated region
      $region45: #{transformer_forward.1} parent=5 // pred_check
        _
      $region46: #{transformer_forward.1} parent=5 // pred_check_branch
        %327 = sbr.rel (%p324) target = $region48
      $region47: #{transformer_forward.1} parent=5 // pred_region
        %s328 = ssub.s32 %s19, 1
        %s329 = sand.u32 %s44, 1
        %s330 = scalar_lea.sflag [#allocation3], %s329
        %s331 = sand.u32 %s44, 1
        %s332 = smul.addr %s331, 8
        %s333 = scalar_lea.vmem [#allocation2], %s332
        // Predicated region
        $region49: #{transformer_forward.1} parent=47 // pred_check
          %p334 = pneg %p57
        $region50: #{transformer_forward.1} parent=47 // pred_check_branch
          %336 = sbr.rel (%p334) target = $region52
        $region51: #{transformer_forward.1} parent=47 // pred_region
          %337 = dma.done %s330, 128
        $region52: #{transformer_forward.1} parent=47 // pred_fallthru
          _
        %s338 = sand.u32 %s44, 1
        %s339 = scalar_lea.sflag [#allocation3], %s338
        %s340 = sand.u32 %s44, 1
        %s341 = smul.addr %s340, 8
        %s342 = scalar_lea.vmem [#allocation2], %s341
        %p343 = pneg %p57
        %p344 = pneg %p54
        %p345 = scmp.lt.s32.totalorder %s29, 1
        %s346 = scalar_select %p345, %s29, 1
        %s347 = smul.addr %s346, 16
        %s348 = smul.addr %s347, 4
        %s349 = scalar_lea.vmem %s1, %s348
        %p350 = pneg %p83
        %p351 = pneg %p80
        %p352 = scmp.lt.s32.totalorder %s29, 1
        %s353 = scalar_select %p352, %s29, 1
        %s354 = smul.addr %s353, 4
        %s355 = smul.addr %s354, 4
        %s356 = scalar_lea.vmem %s2, %s355
        %p357 = pneg %p109
        %p358 = pneg %p106
        %p359 = scmp.lt.s32.totalorder %s29, 1
        %s360 = scalar_select %p359, %s29, 1
        %s361 = smul.addr %s360, 4
        %s362 = smul.addr %s361, 4
        %s363 = scalar_lea.vmem %s3, %s362
        %p364 = pneg %p135
        %p365 = pneg %p132
        %p366 = scmp.lt.s32.totalorder %s29, 1
        %s367 = scalar_select %p366, %s29, 1
        %s368 = smul.addr %s367, 8
        %s369 = smul.addr %s368, 4
        %s370 = scalar_lea.vmem %s4, %s369
        %p371 = pneg %p161
        %p372 = pneg %p158
        %p373 = scmp.lt.s32.totalorder %s29, 1
        %s374 = scalar_select %p373, %s29, 1
        %s375 = smul.addr %s374, 4
        %s376 = scalar_lea.vmem %s5, %s375
        %p377 = pneg %p187
        %p378 = pneg %p184
        %p379 = scmp.lt.s32.totalorder %s29, 1
        %s380 = scalar_select %p379, %s29, 1
        %s381 = smul.addr %s380, 8
        %s382 = scalar_lea.vmem %s6, %s381
        %p383 = pneg %p213
        %p384 = pneg %p210
        %p385 = pneg %p239
        %p386 = pneg %p236
        %s387 = sand.u32 %s226, 1
        %s388 = scalar_lea.sflag [#allocation4], %s387
        %s389 = sand.u32 %s226, 1
        %s390 = smul.addr %s389, 8
        %s391 = scalar_lea.vmem [#allocation5], %s390
        %p392 = scmp.lt.s32.totalorder %s29, 1
        %s393 = scalar_select %p392, %s29, 1
        %s394 = smul.addr %s393, 16
        %s395 = smul.addr %s394, 4
        %s396 = scalar_lea.vmem %s1, %s395
        %p397 = scmp.lt.s32.totalorder %s29, 1
        %s398 = scalar_select %p397, %s29, 1
        %s399 = smul.addr %s398, 4
        %s400 = smul.addr %s399, 4
        %s401 = scalar_lea.vmem %s2, %s400
        %p402 = scmp.lt.s32.totalorder %s29, 1
        %s403 = scalar_select %p402, %s29, 1
        %s404 = smul.addr %s403, 4
        %s405 = smul.addr %s404, 4
        %s406 = scalar_lea.vmem %s3, %s405
        %p407 = scmp.lt.s32.totalorder %s29, 1
        %s408 = scalar_select %p407, %s29, 1
        %s409 = smul.addr %s408, 8
        %s410 = smul.addr %s409, 4
        %s411 = scalar_lea.vmem %s4, %s410
        %p412 = scmp.lt.s32.totalorder %s29, 1
        %s413 = scalar_select %p412, %s29, 1
        %s414 = smul.addr %s413, 4
        %s415 = scalar_lea.vmem %s5, %s414
        %p416 = scmp.lt.s32.totalorder %s29, 1
        %s417 = scalar_select %p416, %s29, 1
        %s418 = smul.addr %s417, 8
        %s419 = scalar_lea.vmem %s6, %s418
        %p421 = scmp.eq.s32.totalorder %s29, 0
        // Predicated region
        $region53: #{transformer_forward.1} parent=47 // pred_check
          %p422 = pneg %p421
        $region54: #{transformer_forward.1} parent=47 // pred_check_branch
          %424 = sbr.rel (%p422) target = $region56
        $region55: #{transformer_forward.1} parent=47 // pred_region
          %v425 = vld [vmem:[%s333] sm:$0xff]
          %vm426 = vcmask 261120
          %427 = vst.msk [vmem:[%s391] sm:$0xff] %vm426, %v425
        $region56: #{transformer_forward.1} parent=47 // pred_fallthru
          _
        %v428 = vld [vmem:[%s391] sm:$0xff]
        %v429 = vld [vmem:[%s419] sm:$0xff]
        %v430 = vpack.c.bf16 %v428, %v428
        %v431 = vld [vmem:[%s396] sm:$0xf]
        %v432 = vld [vmem:[%s396 + $0x4] sm:$0xf]
        %v433 = vld [vmem:[%s396 + $0x8] sm:$0xf]
        %v434 = vld [vmem:[%s396 + $0xc] sm:$0xf]
        %v435 = vld [vmem:[%s396 + $0x10] sm:$0xf]
        %v436 = vld [vmem:[%s396 + $0x14] sm:$0xf]
        %v437 = vld [vmem:[%s396 + $0x18] sm:$0xf]
        %v438 = vld [vmem:[%s396 + $0x1c] sm:$0xf]
        %v439 = vld [vmem:[%s396 + $0x20] sm:$0xf]
        %v440 = vld [vmem:[%s396 + $0x24] sm:$0xf]
        %v441 = vld [vmem:[%s396 + $0x28] sm:$0xf]
        %v442 = vld [vmem:[%s396 + $0x2c] sm:$0xf]
        %v443 = vld [vmem:[%s396 + $0x30] sm:$0xf]
        %v444 = vld [vmem:[%s396 + $0x34] sm:$0xf]
        %v445 = vld [vmem:[%s396 + $0x38] sm:$0xf]
        %v446 = vld [vmem:[%s396 + $0x3c] sm:$0xf]
        %v447 = vld [vmem:[%s415] sm:$0x1]
        %v448 = vld [vmem:[%s415 + $0x1] sm:$0x1]
        %v449 = vld [vmem:[%s415 + $0x2] sm:$0x1]
        %v450 = vld [vmem:[%s415 + $0x3] sm:$0x1]
        %v455 = vlaneseq
        %v456 = vshrl.u32 %v455, 7
        %v457 = vsub.s32 0, %v456
        %v458 = vrot.slane %v447, %v457
        %v459 = vlaneseq
        %v460 = vshrl.u32 %v459, 7
        %v461 = vsub.s32 0, %v460
        %v462 = vrot.slane %v448, %v461
        %v463 = vlaneseq
        %v464 = vshrl.u32 %v463, 7
        %v465 = vsub.s32 0, %v464
        %v466 = vrot.slane %v449, %v465
        %v467 = vlaneseq
        %v468 = vshrl.u32 %v467, 7
        %v469 = vsub.s32 0, %v468
        %v470 = vrot.slane %v450, %v469
        %v479 = vunpack.c.l.b16 %v431
        %v480 = vunpack.c.l.b16 %v432
        %v481 = vunpack.c.l.b16 %v433
        %v482 = vunpack.c.l.b16 %v434
        %v483 = vpack.c.b16 %v480, %v479
        %v484 = vpack.c.b16 %v482, %v481
        %vm487 = vcmask 261120
        %v489 = vsel %vm487, %v430, 0
        %491 = vmatprep.subr.bf16.mxu0 0
        %492 = vmatpush1.bf16.msra.mxu0 %v483
        %493 = vmatprep.subr.bf16.mxu0 0
        %494 = vmatpush1.bf16.msra.mxu0 %v484
        %495 = vmatprep.subr.bf16.mxu0 0
        %496 = vmatpush1.bf16.msra.mxu0 0
        %497 = vmatprep.subr.bf16.mxu0 0
        %498 = vmatpush1.bf16.msra.mxu0 0
        %499 = vmatprep.subr.bf16.mxu0 0
        %500 = vmatpush1.bf16.msra.mxu0 0
        %501 = vmatprep.subr.bf16.mxu0 0
        %502 = vmatpush1.bf16.msra.mxu0 0
        %503 = vmatprep.subr.bf16.mxu0 0
        %504 = vmatpush1.bf16.msra.mxu0 0
        %505 = vmatprep.subr.bf16.mxu0 0
        %506 = vmatpush1.bf16.msra.mxu0 0
        %507 = vmatprep.subr.bf16.mxu0 0
        %508 = vmatpush1.bf16.msra.mxu0 0
        %509 = vmatprep.subr.bf16.mxu0 0
        %510 = vmatpush1.bf16.msra.mxu0 0
        %511 = vmatprep.subr.bf16.mxu0 0
        %512 = vmatpush1.bf16.msra.mxu0 0
        %513 = vmatprep.subr.bf16.mxu0 0
        %514 = vmatpush1.bf16.msra.mxu0 0
        %515 = vmatprep.subr.bf16.mxu0 0
        %516 = vmatpush1.bf16.msra.mxu0 0
        %517 = vmatprep.subr.bf16.mxu0 0
        %518 = vmatpush1.bf16.msra.mxu0 0
        %519 = vmatprep.subr.bf16.mxu0 0
        %520 = vmatpush1.bf16.msra.mxu0 0
        %521 = vmatprep.subr.bf16.mxu0 0
        %522 = vmatpush1.bf16.msra.mxu0 0
        %523 = vmatprep.mubr.bf16.mxu0 0
        %524 = vmatmul.mubr.bf16.gmra.mrb[0].mxu0 %v489
        %v525 = vpop.f32.mrb[0].mxu0
        %v526 = vadd.f32 %v458, %v525
        %v527 = vpop.f32.mrb[0].mxu0
        %v528 = vpop.f32.mrb[0].mxu0
        %v529 = vpop.f32.mrb[0].mxu0
        %530 = vdwg.mxu0
        %v535 = vunpack.c.l.b16 %v435
        %v536 = vunpack.c.l.b16 %v436
        %v537 = vunpack.c.l.b16 %v437
        %v538 = vunpack.c.l.b16 %v438
        %v539 = vpack.c.b16 %v536, %v535
        %v540 = vpack.c.b16 %v538, %v537
        %543 = vmatprep.subr.bf16.mxu0 0
        %544 = vmatpush1.bf16.msra.mxu0 %v539
        %545 = vmatprep.subr.bf16.mxu0 0
        %546 = vmatpush1.bf16.msra.mxu0 %v540
        %547 = vmatprep.subr.bf16.mxu0 0
        %548 = vmatpush1.bf16.msra.mxu0 0
        %549 = vmatprep.subr.bf16.mxu0 0
        %550 = vmatpush1.bf16.msra.mxu0 0
        %551 = vmatprep.subr.bf16.mxu0 0
        %552 = vmatpush1.bf16.msra.mxu0 0
        %553 = vmatprep.subr.bf16.mxu0 0
        %554 = vmatpush1.bf16.msra.mxu0 0
        %555 = vmatprep.subr.bf16.mxu0 0
        %556 = vmatpush1.bf16.msra.mxu0 0
        %557 = vmatprep.subr.bf16.mxu0 0
        %558 = vmatpush1.bf16.msra.mxu0 0
        %559 = vmatprep.subr.bf16.mxu0 0
        %560 = vmatpush1.bf16.msra.mxu0 0
        %561 = vmatprep.subr.bf16.mxu0 0
        %562 = vmatpush1.bf16.msra.mxu0 0
        %563 = vmatprep.subr.bf16.mxu0 0
        %564 = vmatpush1.bf16.msra.mxu0 0
        %565 = vmatprep.subr.bf16.mxu0 0
        %566 = vmatpush1.bf16.msra.mxu0 0
        %567 = vmatprep.subr.bf16.mxu0 0
        %568 = vmatpush1.bf16.msra.mxu0 0
        %569 = vmatprep.subr.bf16.mxu0 0
        %570 = vmatpush1.bf16.msra.mxu0 0
        %571 = vmatprep.subr.bf16.mxu0 0
        %572 = vmatpush1.bf16.msra.mxu0 0
        %573 = vmatprep.subr.bf16.mxu0 0
        %574 = vmatpush1.bf16.msra.mxu0 0
        %575 = vmatprep.mubr.bf16.mxu0 0
        %576 = vmatmul.mubr.bf16.gmra.mrb[0].mxu0 %v489
        %v577 = vpop.f32.mrb[0].mxu0
        %v578 = vadd.f32 %v462, %v577
        %v579 = vpop.f32.mrb[0].mxu0
        %v580 = vpop.f32.mrb[0].mxu0
        %v581 = vpop.f32.mrb[0].mxu0
        %582 = vdwg.mxu0
        %v587 = vunpack.c.l.b16 %v439
        %v588 = vunpack.c.l.b16 %v440
        %v589 = vunpack.c.l.b16 %v441
        %v590 = vunpack.c.l.b16 %v442
        %v591 = vpack.c.b16 %v588, %v587
        %v592 = vpack.c.b16 %v590, %v589
        %595 = vmatprep.subr.bf16.mxu0 0
        %596 = vmatpush1.bf16.msra.mxu0 %v591
        %597 = vmatprep.subr.bf16.mxu0 0
        %598 = vmatpush1.bf16.msra.mxu0 %v592
        %599 = vmatprep.subr.bf16.mxu0 0
        %600 = vmatpush1.bf16.msra.mxu0 0
        %601 = vmatprep.subr.bf16.mxu0 0
        %602 = vmatpush1.bf16.msra.mxu0 0
        %603 = vmatprep.subr.bf16.mxu0 0
        %604 = vmatpush1.bf16.msra.mxu0 0
        %605 = vmatprep.subr.bf16.mxu0 0
        %606 = vmatpush1.bf16.msra.mxu0 0
        %607 = vmatprep.subr.bf16.mxu0 0
        %608 = vmatpush1.bf16.msra.mxu0 0
        %609 = vmatprep.subr.bf16.mxu0 0
        %610 = vmatpush1.bf16.msra.mxu0 0
        %611 = vmatprep.subr.bf16.mxu0 0
        %612 = vmatpush1.bf16.msra.mxu0 0
        %613 = vmatprep.subr.bf16.mxu0 0
        %614 = vmatpush1.bf16.msra.mxu0 0
        %615 = vmatprep.subr.bf16.mxu0 0
        %616 = vmatpush1.bf16.msra.mxu0 0
        %617 = vmatprep.subr.bf16.mxu0 0
        %618 = vmatpush1.bf16.msra.mxu0 0
        %619 = vmatprep.subr.bf16.mxu0 0
        %620 = vmatpush1.bf16.msra.mxu0 0
        %621 = vmatprep.subr.bf16.mxu0 0
        %622 = vmatpush1.bf16.msra.mxu0 0
        %623 = vmatprep.subr.bf16.mxu0 0
        %624 = vmatpush1.bf16.msra.mxu0 0
        %625 = vmatprep.subr.bf16.mxu0 0
        %626 = vmatpush1.bf16.msra.mxu0 0
        %627 = vmatprep.mubr.bf16.mxu0 0
        %628 = vmatmul.mubr.bf16.gmra.mrb[0].mxu0 %v489
        %v629 = vpop.f32.mrb[0].mxu0
        %v630 = vadd.f32 %v466, %v629
        %v631 = vpop.f32.mrb[0].mxu0
        %v632 = vpop.f32.mrb[0].mxu0
        %v633 = vpop.f32.mrb[0].mxu0
        %634 = vdwg.mxu0
        %v639 = vunpack.c.l.b16 %v443
        %v640 = vunpack.c.l.b16 %v444
        %v641 = vunpack.c.l.b16 %v445
        %v642 = vunpack.c.l.b16 %v446
        %v643 = vpack.c.b16 %v640, %v639
        %v644 = vpack.c.b16 %v642, %v641
        %647 = vmatprep.subr.bf16.mxu0 0
        %648 = vmatpush1.bf16.msra.mxu0 %v643
        %649 = vmatprep.subr.bf16.mxu0 0
        %650 = vmatpush1.bf16.msra.mxu0 %v644
        %651 = vmatprep.subr.bf16.mxu0 0
        %652 = vmatpush1.bf16.msra.mxu0 0
        %653 = vmatprep.subr.bf16.mxu0 0
        %654 = vmatpush1.bf16.msra.mxu0 0
        %655 = vmatprep.subr.bf16.mxu0 0
        %656 = vmatpush1.bf16.msra.mxu0 0
        %657 = vmatprep.subr.bf16.mxu0 0
        %658 = vmatpush1.bf16.msra.mxu0 0
        %659 = vmatprep.subr.bf16.mxu0 0
        %660 = vmatpush1.bf16.msra.mxu0 0
        %661 = vmatprep.subr.bf16.mxu0 0
        %662 = vmatpush1.bf16.msra.mxu0 0
        %663 = vmatprep.subr.bf16.mxu0 0
        %664 = vmatpush1.bf16.msra.mxu0 0
        %665 = vmatprep.subr.bf16.mxu0 0
        %666 = vmatpush1.bf16.msra.mxu0 0
        %667 = vmatprep.subr.bf16.mxu0 0
        %668 = vmatpush1.bf16.msra.mxu0 0
        %669 = vmatprep.subr.bf16.mxu0 0
        %670 = vmatpush1.bf16.msra.mxu0 0
        %671 = vmatprep.subr.bf16.mxu0 0
        %672 = vmatpush1.bf16.msra.mxu0 0
        %673 = vmatprep.subr.bf16.mxu0 0
        %674 = vmatpush1.bf16.msra.mxu0 0
        %675 = vmatprep.subr.bf16.mxu0 0
        %676 = vmatpush1.bf16.msra.mxu0 0
        %677 = vmatprep.subr.bf16.mxu0 0
        %678 = vmatpush1.bf16.msra.mxu0 0
        %679 = vmatprep.mubr.bf16.mxu0 0
        %680 = vmatmul.mubr.bf16.gmra.mrb[0].mxu0 %v489
        %v681 = vpop.f32.mrb[0].mxu0
        %v682 = vadd.f32 %v470, %v681
        %v683 = vpop.f32.mrb[0].mxu0
        %v684 = vpop.f32.mrb[0].mxu0
        %v685 = vpop.f32.mrb[0].mxu0
        %686 = vdwg.mxu0
        %v687 = vpack.c.bf16 %v526, %v526
        %v688 = vpack.c.bf16 %v578, %v578
        %v689 = vpack.c.bf16 %v630, %v630
        %v690 = vpack.c.bf16 %v682, %v682
        %692 = vrot.lane.b32.xlu0 %v687, 120
        %v693 = vpop.permute.xlu0 %692
        %vm694 = vcmask 64512
        %v696 = vsel %vm694, %v687, 0
        %v699 = vsel %vm694, %v693, 0
        %701 = vmatprep.subr.bf16.mxu0 0
        %702 = vmatpush1.bf16.xpose.msra.mxu0 %v699
        %703 = vmatprep.subr.bf16.mxu0 0
        %704 = vmatpush1.bf16.xpose.msra.mxu0 0
        %705 = vmatprep.subr.bf16.mxu0 0
        %706 = vmatpush1.bf16.xpose.msra.mxu0 0
        %707 = vmatprep.subr.bf16.mxu0 0
        %708 = vmatpush1.bf16.xpose.msra.mxu0 0
        %709 = vmatprep.subr.bf16.mxu0 0
        %710 = vmatpush1.bf16.xpose.msra.mxu0 0
        %711 = vmatprep.subr.bf16.mxu0 0
        %712 = vmatpush1.bf16.xpose.msra.mxu0 0
        %713 = vmatprep.subr.bf16.mxu0 0
        %714 = vmatpush1.bf16.xpose.msra.mxu0 0
        %715 = vmatprep.subr.bf16.mxu0 0
        %716 = vmatpush1.bf16.xpose.msra.mxu0 0
        %717 = vmatprep.subr.bf16.mxu0 0
        %718 = vmatpush1.bf16.xpose.msra.mxu0 0
        %719 = vmatprep.subr.bf16.mxu0 0
        %720 = vmatpush1.bf16.xpose.msra.mxu0 0
        %721 = vmatprep.subr.bf16.mxu0 0
        %722 = vmatpush1.bf16.xpose.msra.mxu0 0
        %723 = vmatprep.subr.bf16.mxu0 0
        %724 = vmatpush1.bf16.xpose.msra.mxu0 0
        %725 = vmatprep.subr.bf16.mxu0 0
        %726 = vmatpush1.bf16.xpose.msra.mxu0 0
        %727 = vmatprep.subr.bf16.mxu0 0
        %728 = vmatpush1.bf16.xpose.msra.mxu0 0
        %729 = vmatprep.subr.bf16.mxu0 0
        %730 = vmatpush1.bf16.xpose.msra.mxu0 0
        %731 = vmatprep.subr.bf16.mxu0 0
        %732 = vmatpush1.bf16.xpose.msra.mxu0 0
        %733 = vmatprep.mubr.bf16.mxu0 0
        %734 = vmatmul.mubr.bf16.gmra.mrb[0].mxu0 %v696
        %v735 = vpop.f32.mrb[0].mxu0
        %v736 = vadd.f32 0.0, %v735
        %v737 = vpop.f32.mrb[0].mxu0
        %v738 = vpop.f32.mrb[0].mxu0
        %v739 = vpop.f32.mrb[0].mxu0
        %740 = vdwg.mxu0
        %742 = vrot.lane.b32.xlu0 %v688, 120
        %v743 = vpop.permute.xlu0 %742
        %v745 = vsel %vm694, %v688, 0
        %v748 = vsel %vm694, %v743, 0
        %750 = vmatprep.subr.bf16.mxu0 0
        %751 = vmatpush1.bf16.xpose.msra.mxu0 %v748
        %752 = vmatprep.subr.bf16.mxu0 0
        %753 = vmatpush1.bf16.xpose.msra.mxu0 0
        %754 = vmatprep.subr.bf16.mxu0 0
        %755 = vmatpush1.bf16.xpose.msra.mxu0 0
        %756 = vmatprep.subr.bf16.mxu0 0
        %757 = vmatpush1.bf16.xpose.msra.mxu0 0
        %758 = vmatprep.subr.bf16.mxu0 0
        %759 = vmatpush1.bf16.xpose.msra.mxu0 0
        %760 = vmatprep.subr.bf16.mxu0 0
        %761 = vmatpush1.bf16.xpose.msra.mxu0 0
        %762 = vmatprep.subr.bf16.mxu0 0
        %763 = vmatpush1.bf16.xpose.msra.mxu0 0
        %764 = vmatprep.subr.bf16.mxu0 0
        %765 = vmatpush1.bf16.xpose.msra.mxu0 0
        %766 = vmatprep.subr.bf16.mxu0 0
        %767 = vmatpush1.bf16.xpose.msra.mxu0 0
        %768 = vmatprep.subr.bf16.mxu0 0
        %769 = vmatpush1.bf16.xpose.msra.mxu0 0
        %770 = vmatprep.subr.bf16.mxu0 0
        %771 = vmatpush1.bf16.xpose.msra.mxu0 0
        %772 = vmatprep.subr.bf16.mxu0 0
        %773 = vmatpush1.bf16.xpose.msra.mxu0 0
        %774 = vmatprep.subr.bf16.mxu0 0
        %775 = vmatpush1.bf16.xpose.msra.mxu0 0
        %776 = vmatprep.subr.bf16.mxu0 0
        %777 = vmatpush1.bf16.xpose.msra.mxu0 0
        %778 = vmatprep.subr.bf16.mxu0 0
        %779 = vmatpush1.bf16.xpose.msra.mxu0 0
        %780 = vmatprep.subr.bf16.mxu0 0
        %781 = vmatpush1.bf16.xpose.msra.mxu0 0
        %782 = vmatprep.mubr.bf16.mxu0 0
        %783 = vmatmul.mubr.bf16.gmra.mrb[0].mxu0 %v745
        %v784 = vpop.f32.mrb[0].mxu0
        %v785 = vadd.f32 0.0, %v784
        %v786 = vpop.f32.mrb[0].mxu0
        %v787 = vpop.f32.mrb[0].mxu0
        %v788 = vpop.f32.mrb[0].mxu0
        %789 = vdwg.mxu0
        %791 = vrot.lane.b32.xlu0 %v689, 120
        %v792 = vpop.permute.xlu0 %791
        %v794 = vsel %vm694, %v689, 0
        %v797 = vsel %vm694, %v792, 0
        %799 = vmatprep.subr.bf16.mxu0 0
        %800 = vmatpush1.bf16.xpose.msra.mxu0 %v797
        %801 = vmatprep.subr.bf16.mxu0 0
        %802 = vmatpush1.bf16.xpose.msra.mxu0 0
        %803 = vmatprep.subr.bf16.mxu0 0
        %804 = vmatpush1.bf16.xpose.msra.mxu0 0
        %805 = vmatprep.subr.bf16.mxu0 0
        %806 = vmatpush1.bf16.xpose.msra.mxu0 0
        %807 = vmatprep.subr.bf16.mxu0 0
        %808 = vmatpush1.bf16.xpose.msra.mxu0 0
        %809 = vmatprep.subr.bf16.mxu0 0
        %810 = vmatpush1.bf16.xpose.msra.mxu0 0
        %811 = vmatprep.subr.bf16.mxu0 0
        %812 = vmatpush1.bf16.xpose.msra.mxu0 0
        %813 = vmatprep.subr.bf16.mxu0 0
        %814 = vmatpush1.bf16.xpose.msra.mxu0 0
        %815 = vmatprep.subr.bf16.mxu0 0
        %816 = vmatpush1.bf16.xpose.msra.mxu0 0
        %817 = vmatprep.subr.bf16.mxu0 0
        %818 = vmatpush1.bf16.xpose.msra.mxu0 0
        %819 = vmatprep.subr.bf16.mxu0 0
        %820 = vmatpush1.bf16.xpose.msra.mxu0 0
        %821 = vmatprep.subr.bf16.mxu0 0
        %822 = vmatpush1.bf16.xpose.msra.mxu0 0
        %823 = vmatprep.subr.bf16.mxu0 0
        %824 = vmatpush1.bf16.xpose.msra.mxu0 0
        %825 = vmatprep.subr.bf16.mxu0 0
        %826 = vmatpush1.bf16.xpose.msra.mxu0 0
        %827 = vmatprep.subr.bf16.mxu0 0
        %828 = vmatpush1.bf16.xpose.msra.mxu0 0
        %829 = vmatprep.subr.bf16.mxu0 0
        %830 = vmatpush1.bf16.xpose.msra.mxu0 0
        %831 = vmatprep.mubr.bf16.mxu0 0
        %832 = vmatmul.mubr.bf16.gmra.mrb[0].mxu0 %v794
        %v833 = vpop.f32.mrb[0].mxu0
        %v834 = vadd.f32 0.0, %v833
        %v835 = vpop.f32.mrb[0].mxu0
        %v836 = vpop.f32.mrb[0].mxu0
        %v837 = vpop.f32.mrb[0].mxu0
        %838 = vdwg.mxu0
        %840 = vrot.lane.b32.xlu0 %v690, 120
        %v841 = vpop.permute.xlu0 %840
        %v843 = vsel %vm694, %v690, 0
        %v846 = vsel %vm694, %v841, 0
        %848 = vmatprep.subr.bf16.mxu0 0
        %849 = vmatpush1.bf16.xpose.msra.mxu0 %v846
        %850 = vmatprep.subr.bf16.mxu0 0
        %851 = vmatpush1.bf16.xpose.msra.mxu0 0
        %852 = vmatprep.subr.bf16.mxu0 0
        %853 = vmatpush1.bf16.xpose.msra.mxu0 0
        %854 = vmatprep.subr.bf16.mxu0 0
        %855 = vmatpush1.bf16.xpose.msra.mxu0 0
        %856 = vmatprep.subr.bf16.mxu0 0
        %857 = vmatpush1.bf16.xpose.msra.mxu0 0
        %858 = vmatprep.subr.bf16.mxu0 0
        %859 = vmatpush1.bf16.xpose.msra.mxu0 0
        %860 = vmatprep.subr.bf16.mxu0 0
        %861 = vmatpush1.bf16.xpose.msra.mxu0 0
        %862 = vmatprep.subr.bf16.mxu0 0
        %863 = vmatpush1.bf16.xpose.msra.mxu0 0
        %864 = vmatprep.subr.bf16.mxu0 0
        %865 = vmatpush1.bf16.xpose.msra.mxu0 0
        %866 = vmatprep.subr.bf16.mxu0 0
        %867 = vmatpush1.bf16.xpose.msra.mxu0 0
        %868 = vmatprep.subr.bf16.mxu0 0
        %869 = vmatpush1.bf16.xpose.msra.mxu0 0
        %870 = vmatprep.subr.bf16.mxu0 0
        %871 = vmatpush1.bf16.xpose.msra.mxu0 0
        %872 = vmatprep.subr.bf16.mxu0 0
        %873 = vmatpush1.bf16.xpose.msra.mxu0 0
        %874 = vmatprep.subr.bf16.mxu0 0
        %875 = vmatpush1.bf16.xpose.msra.mxu0 0
        %876 = vmatprep.subr.bf16.mxu0 0
        %877 = vmatpush1.bf16.xpose.msra.mxu0 0
        %878 = vmatprep.subr.bf16.mxu0 0
        %879 = vmatpush1.bf16.xpose.msra.mxu0 0
        %880 = vmatprep.mubr.bf16.mxu0 0
        %881 = vmatmul.mubr.bf16.gmra.mrb[0].mxu0 %v843
        %v882 = vpop.f32.mrb[0].mxu0
        %v883 = vadd.f32 0.0, %v882
        %v884 = vpop.f32.mrb[0].mxu0
        %v885 = vpop.f32.mrb[0].mxu0
        %v886 = vpop.f32.mrb[0].mxu0
        %887 = vdwg.mxu0
        %v888 = vmul.f32 %v736, 0.35355338
        %v889 = vmul.f32 %v785, 0.35355338
        %v890 = vmul.f32 %v834, 0.35355338
        %v891 = vmul.f32 %v883, 0.35355338
        %v892 = vsel %vm694, %v888, -inf
        %893 = vmax.xlane.f32.xlu0 %v892
        %v894 = vpop.xlane.xlu0 %893
        %v895 = vsel %vm694, %v889, -inf
        %896 = vmax.xlane.f32.xlu0 %v895
        %v897 = vpop.xlane.xlu0 %896
        %v898 = vsel %vm694, %v890, -inf
        %899 = vmax.xlane.f32.xlu0 %v898
        %v900 = vpop.xlane.xlu0 %899
        %v901 = vsel %vm694, %v891, -inf
        %902 = vmax.xlane.f32.xlu0 %v901
        %v903 = vpop.xlane.xlu0 %902
        %v904 = vsub.f32 %v888, %v894
        %v905 = vsub.f32 %v889, %v897
        %v906 = vsub.f32 %v890, %v900
        %v907 = vsub.f32 %v891, %v903
        %v908 = vmul.f32 %v904, 1.442695
        %v909 = vpow.pop %v908
        %v910 = vmul.f32 %v905, 1.442695
        %v911 = vpow.pop %v910
        %v912 = vmul.f32 %v906, 1.442695
        %v913 = vpow.pop %v912
        %v914 = vmul.f32 %v907, 1.442695
        %v915 = vpow.pop %v914
        %v916 = vsel %vm694, %v909, 0.0
        %917 = vadd.xlane.f32.xlu0 %v916
        %v918 = vpop.xlane.xlu0 %917
        %v919 = vsel %vm694, %v911, 0.0
        %920 = vadd.xlane.f32.xlu0 %v919
        %v921 = vpop.xlane.xlu0 %920
        %v922 = vsel %vm694, %v913, 0.0
        %923 = vadd.xlane.f32.xlu0 %v922
        %v924 = vpop.xlane.xlu0 %923
        %v925 = vsel %vm694, %v915, 0.0
        %926 = vadd.xlane.f32.xlu0 %v925
        %v927 = vpop.xlane.xlu0 %926
        %v928 = vrcp.pop %v918
        %v929 = vrcp.pop %v921
        %v930 = vrcp.pop %v924
        %v931 = vrcp.pop %v927
        %v932 = vmul.f32 %v909, %v928
        %v933 = vmul.f32 %v911, %v929
        %v934 = vmul.f32 %v913, %v930
        %v935 = vmul.f32 %v915, %v931
        %v936 = vpack.c.bf16 %v932, %v932
        %v937 = vpack.c.bf16 %v933, %v933
        %v938 = vpack.c.bf16 %v934, %v934
        %v939 = vpack.c.bf16 %v935, %v935
        %940 = vrot.lane.b32.xlu0 %v687, 112
        %v941 = vpop.permute.xlu0 %940
        %v943 = vsel %vm694, %v936, 0
        %vm945 = vcmask 1043456
        %v947 = vsel %vm945, %v941, 0
        %949 = vmatprep.subr.bf16.mxu0 0
        %950 = vmatpush1.bf16.msra.mxu0 %v947
        %951 = vmatprep.subr.bf16.mxu0 0
        %952 = vmatpush1.bf16.msra.mxu0 0
        %953 = vmatprep.subr.bf16.mxu0 0
        %954 = vmatpush1.bf16.msra.mxu0 0
        %955 = vmatprep.subr.bf16.mxu0 0
        %956 = vmatpush1.bf16.msra.mxu0 0
        %957 = vmatprep.subr.bf16.mxu0 0
        %958 = vmatpush1.bf16.msra.mxu0 0
        %959 = vmatprep.subr.bf16.mxu0 0
        %960 = vmatpush1.bf16.msra.mxu0 0
        %961 = vmatprep.subr.bf16.mxu0 0
        %962 = vmatpush1.bf16.msra.mxu0 0
        %963 = vmatprep.subr.bf16.mxu0 0
        %964 = vmatpush1.bf16.msra.mxu0 0
        %965 = vmatprep.subr.bf16.mxu0 0
        %966 = vmatpush1.bf16.msra.mxu0 0
        %967 = vmatprep.subr.bf16.mxu0 0
        %968 = vmatpush1.bf16.msra.mxu0 0
        %969 = vmatprep.subr.bf16.mxu0 0
        %970 = vmatpush1.bf16.msra.mxu0 0
        %971 = vmatprep.subr.bf16.mxu0 0
        %972 = vmatpush1.bf16.msra.mxu0 0
        %973 = vmatprep.subr.bf16.mxu0 0
        %974 = vmatpush1.bf16.msra.mxu0 0
        %975 = vmatprep.subr.bf16.mxu0 0
        %976 = vmatpush1.bf16.msra.mxu0 0
        %977 = vmatprep.subr.bf16.mxu0 0
        %978 = vmatpush1.bf16.msra.mxu0 0
        %979 = vmatprep.subr.bf16.mxu0 0
        %980 = vmatpush1.bf16.msra.mxu0 0
        %981 = vmatprep.mubr.bf16.mxu0 0
        %982 = vmatmul.mubr.bf16.gmra.mrb[0].mxu0 %v943
        %v983 = vpop.f32.mrb[0].mxu0
        %v984 = vadd.f32 0.0, %v983
        %v985 = vpop.f32.mrb[0].mxu0
        %v986 = vpop.f32.mrb[0].mxu0
        %v987 = vpop.f32.mrb[0].mxu0
        %988 = vdwg.mxu0
        %989 = vrot.lane.b32.xlu0 %v688, 112
        %v990 = vpop.permute.xlu0 %989
        %v992 = vsel %vm694, %v937, 0
        %v995 = vsel %vm945, %v990, 0
        %997 = vmatprep.subr.bf16.mxu0 0
        %998 = vmatpush1.bf16.msra.mxu0 %v995
        %999 = vmatprep.subr.bf16.mxu0 0
        %1000 = vmatpush1.bf16.msra.mxu0 0
        %1001 = vmatprep.subr.bf16.mxu0 0
        %1002 = vmatpush1.bf16.msra.mxu0 0
        %1003 = vmatprep.subr.bf16.mxu0 0
        %1004 = vmatpush1.bf16.msra.mxu0 0
        %1005 = vmatprep.subr.bf16.mxu0 0
        %1006 = vmatpush1.bf16.msra.mxu0 0
        %1007 = vmatprep.subr.bf16.mxu0 0
        %1008 = vmatpush1.bf16.msra.mxu0 0
        %1009 = vmatprep.subr.bf16.mxu0 0
        %1010 = vmatpush1.bf16.msra.mxu0 0
        %1011 = vmatprep.subr.bf16.mxu0 0
        %1012 = vmatpush1.bf16.msra.mxu0 0
        %1013 = vmatprep.subr.bf16.mxu0 0
        %1014 = vmatpush1.bf16.msra.mxu0 0
        %1015 = vmatprep.subr.bf16.mxu0 0
        %1016 = vmatpush1.bf16.msra.mxu0 0
        %1017 = vmatprep.subr.bf16.mxu0 0
        %1018 = vmatpush1.bf16.msra.mxu0 0
        %1019 = vmatprep.subr.bf16.mxu0 0
        %1020 = vmatpush1.bf16.msra.mxu0 0
        %1021 = vmatprep.subr.bf16.mxu0 0
        %1022 = vmatpush1.bf16.msra.mxu0 0
        %1023 = vmatprep.subr.bf16.mxu0 0
        %1024 = vmatpush1.bf16.msra.mxu0 0
        %1025 = vmatprep.subr.bf16.mxu0 0
        %1026 = vmatpush1.bf16.msra.mxu0 0
        %1027 = vmatprep.subr.bf16.mxu0 0
        %1028 = vmatpush1.bf16.msra.mxu0 0
        %1029 = vmatprep.mubr.bf16.mxu0 0
        %1030 = vmatmul.mubr.bf16.gmra.mrb[0].mxu0 %v992
        %v1031 = vpop.f32.mrb[0].mxu0
        %v1032 = vadd.f32 0.0, %v1031
        %v1033 = vpop.f32.mrb[0].mxu0
        %v1034 = vpop.f32.mrb[0].mxu0
        %v1035 = vpop.f32.mrb[0].mxu0
        %1036 = vdwg.mxu0
        %1037 = vrot.lane.b32.xlu0 %v689, 112
        %v1038 = vpop.permute.xlu0 %1037
        %v1040 = vsel %vm694, %v938, 0
        %v1043 = vsel %vm945, %v1038, 0
        %1045 = vmatprep.subr.bf16.mxu0 0
        %1046 = vmatpush1.bf16.msra.mxu0 %v1043
        %1047 = vmatprep.subr.bf16.mxu0 0
        %1048 = vmatpush1.bf16.msra.mxu0 0
        %1049 = vmatprep.subr.bf16.mxu0 0
        %1050 = vmatpush1.bf16.msra.mxu0 0
        %1051 = vmatprep.subr.bf16.mxu0 0
        %1052 = vmatpush1.bf16.msra.mxu0 0
        %1053 = vmatprep.subr.bf16.mxu0 0
        %1054 = vmatpush1.bf16.msra.mxu0 0
        %1055 = vmatprep.subr.bf16.mxu0 0
        %1056 = vmatpush1.bf16.msra.mxu0 0
        %1057 = vmatprep.subr.bf16.mxu0 0
        %1058 = vmatpush1.bf16.msra.mxu0 0
        %1059 = vmatprep.subr.bf16.mxu0 0
        %1060 = vmatpush1.bf16.msra.mxu0 0
        %1061 = vmatprep.subr.bf16.mxu0 0
        %1062 = vmatpush1.bf16.msra.mxu0 0
        %1063 = vmatprep.subr.bf16.mxu0 0
        %1064 = vmatpush1.bf16.msra.mxu0 0
        %1065 = vmatprep.subr.bf16.mxu0 0
        %1066 = vmatpush1.bf16.msra.mxu0 0
        %1067 = vmatprep.subr.bf16.mxu0 0
        %1068 = vmatpush1.bf16.msra.mxu0 0
        %1069 = vmatprep.subr.bf16.mxu0 0
        %1070 = vmatpush1.bf16.msra.mxu0 0
        %1071 = vmatprep.subr.bf16.mxu0 0
        %1072 = vmatpush1.bf16.msra.mxu0 0
        %1073 = vmatprep.subr.bf16.mxu0 0
        %1074 = vmatpush1.bf16.msra.mxu0 0
        %1075 = vmatprep.subr.bf16.mxu0 0
        %1076 = vmatpush1.bf16.msra.mxu0 0
        %1077 = vmatprep.mubr.bf16.mxu0 0
        %1078 = vmatmul.mubr.bf16.gmra.mrb[0].mxu0 %v1040
        %v1079 = vpop.f32.mrb[0].mxu0
        %v1080 = vadd.f32 0.0, %v1079
        %v1081 = vpop.f32.mrb[0].mxu0
        %v1082 = vpop.f32.mrb[0].mxu0
        %v1083 = vpop.f32.mrb[0].mxu0
        %1084 = vdwg.mxu0
        %1085 = vrot.lane.b32.xlu0 %v690, 112
        %v1086 = vpop.permute.xlu0 %1085
        %v1088 = vsel %vm694, %v939, 0
        %v1091 = vsel %vm945, %v1086, 0
        %1093 = vmatprep.subr.bf16.mxu0 0
        %1094 = vmatpush1.bf16.msra.mxu0 %v1091
        %1095 = vmatprep.subr.bf16.mxu0 0
        %1096 = vmatpush1.bf16.msra.mxu0 0
        %1097 = vmatprep.subr.bf16.mxu0 0
        %1098 = vmatpush1.bf16.msra.mxu0 0
        %1099 = vmatprep.subr.bf16.mxu0 0
        %1100 = vmatpush1.bf16.msra.mxu0 0
        %1101 = vmatprep.subr.bf16.mxu0 0
        %1102 = vmatpush1.bf16.msra.mxu0 0
        %1103 = vmatprep.subr.bf16.mxu0 0
        %1104 = vmatpush1.bf16.msra.mxu0 0
        %1105 = vmatprep.subr.bf16.mxu0 0
        %1106 = vmatpush1.bf16.msra.mxu0 0
        %1107 = vmatprep.subr.bf16.mxu0 0
        %1108 = vmatpush1.bf16.msra.mxu0 0
        %1109 = vmatprep.subr.bf16.mxu0 0
        %1110 = vmatpush1.bf16.msra.mxu0 0
        %1111 = vmatprep.subr.bf16.mxu0 0
        %1112 = vmatpush1.bf16.msra.mxu0 0
        %1113 = vmatprep.subr.bf16.mxu0 0
        %1114 = vmatpush1.bf16.msra.mxu0 0
        %1115 = vmatprep.subr.bf16.mxu0 0
        %1116 = vmatpush1.bf16.msra.mxu0 0
        %1117 = vmatprep.subr.bf16.mxu0 0
        %1118 = vmatpush1.bf16.msra.mxu0 0
        %1119 = vmatprep.subr.bf16.mxu0 0
        %1120 = vmatpush1.bf16.msra.mxu0 0
        %1121 = vmatprep.subr.bf16.mxu0 0
        %1122 = vmatpush1.bf16.msra.mxu0 0
        %1123 = vmatprep.subr.bf16.mxu0 0
        %1124 = vmatpush1.bf16.msra.mxu0 0
        %1125 = vmatprep.mubr.bf16.mxu0 0
        %1126 = vmatmul.mubr.bf16.gmra.mrb[0].mxu0 %v1088
        %v1127 = vpop.f32.mrb[0].mxu0
        %v1128 = vadd.f32 0.0, %v1127
        %v1129 = vpop.f32.mrb[0].mxu0
        %v1130 = vpop.f32.mrb[0].mxu0
        %v1131 = vpop.f32.mrb[0].mxu0
        %1132 = vdwg.mxu0
        %v1133 = vpack.c.bf16 %v984, %v984
        %v1134 = vpack.c.bf16 %v1032, %v1032
        %v1135 = vpack.c.bf16 %v1080, %v1080
        %v1136 = vpack.c.bf16 %v1128, %v1128
        %v1137 = vld [vmem:[%s401] sm:$0xf]
        %v1138 = vld [vmem:[%s401 + $0x4] sm:$0xf]
        %v1139 = vld [vmem:[%s401 + $0x8] sm:$0xf]
        %v1140 = vld [vmem:[%s401 + $0xc] sm:$0xf]
        %v1142 = vsel %vm694, %v1133, 0
        %v1145 = vsel %vm945, %v1137, 0
        %1147 = vmatprep.subr.bf16.mxu0 0
        %1148 = vmatpush1.bf16.msra.mxu0 %v1145
        %1149 = vmatprep.subr.bf16.mxu0 0
        %1150 = vmatpush1.bf16.msra.mxu0 0
        %1151 = vmatprep.subr.bf16.mxu0 0
        %1152 = vmatpush1.bf16.msra.mxu0 0
        %1153 = vmatprep.subr.bf16.mxu0 0
        %1154 = vmatpush1.bf16.msra.mxu0 0
        %1155 = vmatprep.subr.bf16.mxu0 0
        %1156 = vmatpush1.bf16.msra.mxu0 0
        %1157 = vmatprep.subr.bf16.mxu0 0
        %1158 = vmatpush1.bf16.msra.mxu0 0
        %1159 = vmatprep.subr.bf16.mxu0 0
        %1160 = vmatpush1.bf16.msra.mxu0 0
        %1161 = vmatprep.subr.bf16.mxu0 0
        %1162 = vmatpush1.bf16.msra.mxu0 0
        %1163 = vmatprep.subr.bf16.mxu0 0
        %1164 = vmatpush1.bf16.msra.mxu0 0
        %1165 = vmatprep.subr.bf16.mxu0 0
        %1166 = vmatpush1.bf16.msra.mxu0 0
        %1167 = vmatprep.subr.bf16.mxu0 0
        %1168 = vmatpush1.bf16.msra.mxu0 0
        %1169 = vmatprep.subr.bf16.mxu0 0
        %1170 = vmatpush1.bf16.msra.mxu0 0
        %1171 = vmatprep.subr.bf16.mxu0 0
        %1172 = vmatpush1.bf16.msra.mxu0 0
        %1173 = vmatprep.subr.bf16.mxu0 0
        %1174 = vmatpush1.bf16.msra.mxu0 0
        %1175 = vmatprep.subr.bf16.mxu0 0
        %1176 = vmatpush1.bf16.msra.mxu0 0
        %1177 = vmatprep.subr.bf16.mxu0 0
        %1178 = vmatpush1.bf16.msra.mxu0 0
        %1179 = vmatprep.mubr.bf16.mxu0 0
        %1180 = vmatmul.mubr.bf16.gmra.mrb[0].mxu0 %v1142
        %v1181 = vpop.f32.mrb[0].mxu0
        %v1182 = vadd.f32 0.0, %v1181
        %v1183 = vpop.f32.mrb[0].mxu0
        %v1184 = vpop.f32.mrb[0].mxu0
        %v1185 = vpop.f32.mrb[0].mxu0
        %1186 = vdwg.mxu0
        %v1188 = vsel %vm694, %v1134, 0
        %v1191 = vsel %vm945, %v1138, 0
        %1193 = vmatprep.subr.bf16.mxu0 0
        %1194 = vmatpush1.bf16.msra.mxu0 %v1191
        %1195 = vmatprep.subr.bf16.mxu0 0
        %1196 = vmatpush1.bf16.msra.mxu0 0
        %1197 = vmatprep.subr.bf16.mxu0 0
        %1198 = vmatpush1.bf16.msra.mxu0 0
        %1199 = vmatprep.subr.bf16.mxu0 0
        %1200 = vmatpush1.bf16.msra.mxu0 0
        %1201 = vmatprep.subr.bf16.mxu0 0
        %1202 = vmatpush1.bf16.msra.mxu0 0
        %1203 = vmatprep.subr.bf16.mxu0 0
        %1204 = vmatpush1.bf16.msra.mxu0 0
        %1205 = vmatprep.subr.bf16.mxu0 0
        %1206 = vmatpush1.bf16.msra.mxu0 0
        %1207 = vmatprep.subr.bf16.mxu0 0
        %1208 = vmatpush1.bf16.msra.mxu0 0
        %1209 = vmatprep.subr.bf16.mxu0 0
        %1210 = vmatpush1.bf16.msra.mxu0 0
        %1211 = vmatprep.subr.bf16.mxu0 0
        %1212 = vmatpush1.bf16.msra.mxu0 0
        %1213 = vmatprep.subr.bf16.mxu0 0
        %1214 = vmatpush1.bf16.msra.mxu0 0
        %1215 = vmatprep.subr.bf16.mxu0 0
        %1216 = vmatpush1.bf16.msra.mxu0 0
        %1217 = vmatprep.subr.bf16.mxu0 0
        %1218 = vmatpush1.bf16.msra.mxu0 0
        %1219 = vmatprep.subr.bf16.mxu0 0
        %1220 = vmatpush1.bf16.msra.mxu0 0
        %1221 = vmatprep.subr.bf16.mxu0 0
        %1222 = vmatpush1.bf16.msra.mxu0 0
        %1223 = vmatprep.subr.bf16.mxu0 0
        %1224 = vmatpush1.bf16.msra.mxu0 0
        %1225 = vmatprep.mubr.bf16.mxu0 0
        %1226 = vmatmul.mubr.bf16.gmra.mrb[0].mxu0 %v1188
        %v1227 = vpop.f32.mrb[0].mxu0
        %v1228 = vadd.f32 0.0, %v1227
        %v1229 = vpop.f32.mrb[0].mxu0
        %v1230 = vpop.f32.mrb[0].mxu0
        %v1231 = vpop.f32.mrb[0].mxu0
        %1232 = vdwg.mxu0
        %v1234 = vsel %vm694, %v1135, 0
        %v1237 = vsel %vm945, %v1139, 0
        %1239 = vmatprep.subr.bf16.mxu0 0
        %1240 = vmatpush1.bf16.msra.mxu0 %v1237
        %1241 = vmatprep.subr.bf16.mxu0 0
        %1242 = vmatpush1.bf16.msra.mxu0 0
        %1243 = vmatprep.subr.bf16.mxu0 0
        %1244 = vmatpush1.bf16.msra.mxu0 0
        %1245 = vmatprep.subr.bf16.mxu0 0
        %1246 = vmatpush1.bf16.msra.mxu0 0
        %1247 = vmatprep.subr.bf16.mxu0 0
        %1248 = vmatpush1.bf16.msra.mxu0 0
        %1249 = vmatprep.subr.bf16.mxu0 0
        %1250 = vmatpush1.bf16.msra.mxu0 0
        %1251 = vmatprep.subr.bf16.mxu0 0
        %1252 = vmatpush1.bf16.msra.mxu0 0
        %1253 = vmatprep.subr.bf16.mxu0 0
        %1254 = vmatpush1.bf16.msra.mxu0 0
        %1255 = vmatprep.subr.bf16.mxu0 0
        %1256 = vmatpush1.bf16.msra.mxu0 0
        %1257 = vmatprep.subr.bf16.mxu0 0
        %1258 = vmatpush1.bf16.msra.mxu0 0
        %1259 = vmatprep.subr.bf16.mxu0 0
        %1260 = vmatpush1.bf16.msra.mxu0 0
        %1261 = vmatprep.subr.bf16.mxu0 0
        %1262 = vmatpush1.bf16.msra.mxu0 0
        %1263 = vmatprep.subr.bf16.mxu0 0
        %1264 = vmatpush1.bf16.msra.mxu0 0
        %1265 = vmatprep.subr.bf16.mxu0 0
        %1266 = vmatpush1.bf16.msra.mxu0 0
        %1267 = vmatprep.subr.bf16.mxu0 0
        %1268 = vmatpush1.bf16.msra.mxu0 0
        %1269 = vmatprep.subr.bf16.mxu0 0
        %1270 = vmatpush1.bf16.msra.mxu0 0
        %1271 = vmatprep.mubr.bf16.mxu0 0
        %1272 = vmatmul.mubr.bf16.gmra.mrb[0].mxu0 %v1234
        %v1273 = vpop.f32.mrb[0].mxu0
        %v1274 = vadd.f32 0.0, %v1273
        %v1275 = vpop.f32.mrb[0].mxu0
        %v1276 = vpop.f32.mrb[0].mxu0
        %v1277 = vpop.f32.mrb[0].mxu0
        %1278 = vdwg.mxu0
        %v1280 = vsel %vm694, %v1136, 0
        %v1283 = vsel %vm945, %v1140, 0
        %1285 = vmatprep.subr.bf16.mxu0 0
        %1286 = vmatpush1.bf16.msra.mxu0 %v1283
        %1287 = vmatprep.subr.bf16.mxu0 0
        %1288 = vmatpush1.bf16.msra.mxu0 0
        %1289 = vmatprep.subr.bf16.mxu0 0
        %1290 = vmatpush1.bf16.msra.mxu0 0
        %1291 = vmatprep.subr.bf16.mxu0 0
        %1292 = vmatpush1.bf16.msra.mxu0 0
        %1293 = vmatprep.subr.bf16.mxu0 0
        %1294 = vmatpush1.bf16.msra.mxu0 0
        %1295 = vmatprep.subr.bf16.mxu0 0
        %1296 = vmatpush1.bf16.msra.mxu0 0
        %1297 = vmatprep.subr.bf16.mxu0 0
        %1298 = vmatpush1.bf16.msra.mxu0 0
        %1299 = vmatprep.subr.bf16.mxu0 0
        %1300 = vmatpush1.bf16.msra.mxu0 0
        %1301 = vmatprep.subr.bf16.mxu0 0
        %1302 = vmatpush1.bf16.msra.mxu0 0
        %1303 = vmatprep.subr.bf16.mxu0 0
        %1304 = vmatpush1.bf16.msra.mxu0 0
        %1305 = vmatprep.subr.bf16.mxu0 0
        %1306 = vmatpush1.bf16.msra.mxu0 0
        %1307 = vmatprep.subr.bf16.mxu0 0
        %1308 = vmatpush1.bf16.msra.mxu0 0
        %1309 = vmatprep.subr.bf16.mxu0 0
        %1310 = vmatpush1.bf16.msra.mxu0 0
        %1311 = vmatprep.subr.bf16.mxu0 0
        %1312 = vmatpush1.bf16.msra.mxu0 0
        %1313 = vmatprep.subr.bf16.mxu0 0
        %1314 = vmatpush1.bf16.msra.mxu0 0
        %1315 = vmatprep.subr.bf16.mxu0 0
        %1316 = vmatpush1.bf16.msra.mxu0 0
        %1317 = vmatprep.mubr.bf16.mxu0 0
        %1318 = vmatmul.mubr.bf16.gmra.mrb[0].mxu0 %v1280
        %v1319 = vpop.f32.mrb[0].mxu0
        %v1320 = vadd.f32 0.0, %v1319
        %v1321 = vpop.f32.mrb[0].mxu0
        %v1322 = vpop.f32.mrb[0].mxu0
        %v1323 = vpop.f32.mrb[0].mxu0
        %1324 = vdwg.mxu0
        %v1325 = vsel %vm487, %v1182, 0.0
        %v1326 = vsel %vm487, %v1228, 0.0
        %v1327 = vadd.f32 %v1325, %v1326
        %v1328 = vsel %vm487, %v1274, 0.0
        %v1329 = vadd.f32 %v1327, %v1328
        %v1330 = vsel %vm487, %v1320, 0.0
        %v1331 = vadd.f32 %v1329, %v1330
        %v1332 = vlaneseq
        %v1333 = vshrl.u32 %v1332, 7
        %v1334 = vsub.s32 0, %v1333
        %v1335 = vrot.slane %v429, %v1334
        %v1336 = vadd.f32 %v1331, %v1335
        %v1337 = vadd.f32 %v428, %v1336
        %v1338 = vsel %vm487, %v1337, 0.0
        %1339 = vadd.xlane.f32.xlu0 %v1338
        %v1340 = vpop.xlane.xlu0 %1339
        %v1341 = vrcp.pop 32.0
        %v1342 = vmul.f32 %v1340, %v1341
        %v1343 = vsub.f32 %v1337, %v1342
        %v1344 = vmul.f32 %v1343, %v1343
        %v1345 = vsel %vm487, %v1344, 0.0
        %1346 = vadd.xlane.f32.xlu0 %v1345
        %v1347 = vpop.xlane.xlu0 %1346
        %v1348 = vmul.f32 %v1347, %v1341
        %v1349 = vadd.f32 %v1348, 1e-05
        %v1350 = vrsqrt.pop %v1349
        %v1351 = vmul.f32 %v1343, %v1350
        %v1352 = vlaneseq
        %v1353 = vshrl.u32 %v1352, 7
        %v1354 = vsub.s32 1, %v1353
        %v1355 = vrot.slane %v429, %v1354
        %v1356 = vmul.f32 %v1351, %v1355
        %v1357 = vlaneseq
        %v1358 = vshrl.u32 %v1357, 7
        %v1359 = vsub.s32 2, %v1358
        %v1360 = vrot.slane %v429, %v1359
        %v1361 = vadd.f32 %v1356, %v1360
        %v1362 = vpack.c.bf16 %v1361, %v1361
        %v1363 = vld [vmem:[%s406] sm:$0xf]
        %v1364 = vld [vmem:[%s406 + $0x4] sm:$0xf]
        %v1365 = vld [vmem:[%s406 + $0x8] sm:$0xf]
        %v1366 = vld [vmem:[%s406 + $0xc] sm:$0xf]
        %v1367 = vlaneseq
        %v1368 = vshrl.u32 %v1367, 7
        %v1369 = vsub.s32 3, %v1368
        %v1370 = vrot.slane %v429, %v1369
        %v1375 = vunpack.c.l.b16 %v1363
        %v1376 = vunpack.c.l.b16 %v1364
        %v1377 = vunpack.c.l.b16 %v1365
        %v1378 = vunpack.c.l.b16 %v1366
        %v1379 = vpack.c.b16 %v1376, %v1375
        %v1380 = vpack.c.b16 %v1378, %v1377
        %v1384 = vsel %vm487, %v1362, 0
        %1386 = vmatprep.subr.bf16.mxu0 0
        %1387 = vmatpush1.bf16.msra.mxu0 %v1379
        %1388 = vmatprep.subr.bf16.mxu0 0
        %1389 = vmatpush1.bf16.msra.mxu0 %v1380
        %1390 = vmatprep.subr.bf16.mxu0 0
        %1391 = vmatpush1.bf16.msra.mxu0 0
        %1392 = vmatprep.subr.bf16.mxu0 0
        %1393 = vmatpush1.bf16.msra.mxu0 0
        %1394 = vmatprep.subr.bf16.mxu0 0
        %1395 = vmatpush1.bf16.msra.mxu0 0
        %1396 = vmatprep.subr.bf16.mxu0 0
        %1397 = vmatpush1.bf16.msra.mxu0 0
        %1398 = vmatprep.subr.bf16.mxu0 0
        %1399 = vmatpush1.bf16.msra.mxu0 0
        %1400 = vmatprep.subr.bf16.mxu0 0
        %1401 = vmatpush1.bf16.msra.mxu0 0
        %1402 = vmatprep.subr.bf16.mxu0 0
        %1403 = vmatpush1.bf16.msra.mxu0 0
        %1404 = vmatprep.subr.bf16.mxu0 0
        %1405 = vmatpush1.bf16.msra.mxu0 0
        %1406 = vmatprep.subr.bf16.mxu0 0
        %1407 = vmatpush1.bf16.msra.mxu0 0
        %1408 = vmatprep.subr.bf16.mxu0 0
        %1409 = vmatpush1.bf16.msra.mxu0 0
        %1410 = vmatprep.subr.bf16.mxu0 0
        %1411 = vmatpush1.bf16.msra.mxu0 0
        %1412 = vmatprep.subr.bf16.mxu0 0
        %1413 = vmatpush1.bf16.msra.mxu0 0
        %1414 = vmatprep.subr.bf16.mxu0 0
        %1415 = vmatpush1.bf16.msra.mxu0 0
        %1416 = vmatprep.subr.bf16.mxu0 0
        %1417 = vmatpush1.bf16.msra.mxu0 0
        %1418 = vmatprep.mubr.bf16.mxu0 0
        %1419 = vmatmul.mubr.bf16.gmra.mrb[0].mxu0 %v1384
        %v1420 = vpop.f32.mrb[0].mxu0
        %v1421 = vadd.f32 %v1370, %v1420
        %v1422 = vpop.f32.mrb[0].mxu0
        %v1423 = vpop.f32.mrb[0].mxu0
        %v1424 = vpop.f32.mrb[0].mxu0
        %1425 = vdwg.mxu0
        %v1426 = vmax.f32 %v1421, 0.0
        %v1427 = vpack.c.bf16 %v1426, %v1426
        %v1428 = vld [vmem:[%s411] sm:$0xf]
        %v1429 = vld [vmem:[%s411 + $0x4] sm:$0xf]
        %v1430 = vld [vmem:[%s411 + $0x8] sm:$0xf]
        %v1431 = vld [vmem:[%s411 + $0xc] sm:$0xf]
        %v1432 = vld [vmem:[%s411 + $0x10] sm:$0xf]
        %v1433 = vld [vmem:[%s411 + $0x14] sm:$0xf]
        %v1434 = vld [vmem:[%s411 + $0x18] sm:$0xf]
        %v1435 = vld [vmem:[%s411 + $0x1c] sm:$0xf]
        %v1436 = vlaneseq
        %v1437 = vshrl.u32 %v1436, 7
        %v1438 = vsub.s32 4, %v1437
        %v1439 = vrot.slane %v429, %v1438
        %v1448 = vunpack.c.l.b16 %v1428
        %v1449 = vunpack.c.l.b16 %v1429
        %v1450 = vunpack.c.l.b16 %v1430
        %v1451 = vunpack.c.l.b16 %v1431
        %v1452 = vunpack.c.l.b16 %v1432
        %v1453 = vunpack.c.l.b16 %v1433
        %v1454 = vunpack.c.l.b16 %v1434
        %v1455 = vunpack.c.l.b16 %v1435
        %v1456 = vpack.c.b16 %v1449, %v1448
        %v1457 = vpack.c.b16 %v1451, %v1450
        %v1458 = vpack.c.b16 %v1453, %v1452
        %v1459 = vpack.c.b16 %v1455, %v1454
        %vm1464 = vcmask 523264
        %v1466 = vsel %vm1464, %v1427, 0
        %1468 = vmatprep.subr.bf16.mxu0 0
        %1469 = vmatpush1.bf16.msra.mxu0 %v1456
        %1470 = vmatprep.subr.bf16.mxu0 0
        %1471 = vmatpush1.bf16.msra.mxu0 %v1457
        %1472 = vmatprep.subr.bf16.mxu0 0
        %1473 = vmatpush1.bf16.msra.mxu0 %v1458
        %1474 = vmatprep.subr.bf16.mxu0 0
        %1475 = vmatpush1.bf16.msra.mxu0 %v1459
        %1476 = vmatprep.subr.bf16.mxu0 0
        %1477 = vmatpush1.bf16.msra.mxu0 0
        %1478 = vmatprep.subr.bf16.mxu0 0
        %1479 = vmatpush1.bf16.msra.mxu0 0
        %1480 = vmatprep.subr.bf16.mxu0 0
        %1481 = vmatpush1.bf16.msra.mxu0 0
        %1482 = vmatprep.subr.bf16.mxu0 0
        %1483 = vmatpush1.bf16.msra.mxu0 0
        %1484 = vmatprep.subr.bf16.mxu0 0
        %1485 = vmatpush1.bf16.msra.mxu0 0
        %1486 = vmatprep.subr.bf16.mxu0 0
        %1487 = vmatpush1.bf16.msra.mxu0 0
        %1488 = vmatprep.subr.bf16.mxu0 0
        %1489 = vmatpush1.bf16.msra.mxu0 0
        %1490 = vmatprep.subr.bf16.mxu0 0
        %1491 = vmatpush1.bf16.msra.mxu0 0
        %1492 = vmatprep.subr.bf16.mxu0 0
        %1493 = vmatpush1.bf16.msra.mxu0 0
        %1494 = vmatprep.subr.bf16.mxu0 0
        %1495 = vmatpush1.bf16.msra.mxu0 0
        %1496 = vmatprep.subr.bf16.mxu0 0
        %1497 = vmatpush1.bf16.msra.mxu0 0
        %1498 = vmatprep.subr.bf16.mxu0 0
        %1499 = vmatpush1.bf16.msra.mxu0 0
        %1500 = vmatprep.mubr.bf16.mxu0 0
        %1501 = vmatmul.mubr.bf16.gmra.mrb[0].mxu0 %v1466
        %v1502 = vpop.f32.mrb[0].mxu0
        %v1503 = vadd.f32 %v1439, %v1502
        %v1504 = vpop.f32.mrb[0].mxu0
        %v1505 = vpop.f32.mrb[0].mxu0
        %v1506 = vpop.f32.mrb[0].mxu0
        %1507 = vdwg.mxu0
        %v1508 = vadd.f32 %v1361, %v1503
        %v1509 = vsel %vm487, %v1508, 0.0
        %1510 = vadd.xlane.f32.xlu0 %v1509
        %v1511 = vpop.xlane.xlu0 %1510
        %v1512 = vmul.f32 %v1511, %v1341
        %v1513 = vsub.f32 %v1508, %v1512
        %v1514 = vmul.f32 %v1513, %v1513
        %v1515 = vsel %vm487, %v1514, 0.0
        %1516 = vadd.xlane.f32.xlu0 %v1515
        %v1517 = vpop.xlane.xlu0 %1516
        %v1518 = vmul.f32 %v1517, %v1341
        %v1519 = vadd.f32 %v1518, 1e-05
        %v1520 = vrsqrt.pop %v1519
        %v1521 = vmul.f32 %v1513, %v1520
        %v1522 = vlaneseq
        %v1523 = vshrl.u32 %v1522, 7
        %v1524 = vsub.s32 5, %v1523
        %v1525 = vrot.slane %v429, %v1524
        %v1526 = vmul.f32 %v1521, %v1525
        %v1527 = vlaneseq
        %v1528 = vshrl.u32 %v1527, 7
        %v1529 = vsub.s32 6, %v1528
        %v1530 = vrot.slane %v429, %v1529
        %v1531 = vadd.f32 %v1526, %v1530
        %1532 = vst.msk [vmem:[%s391] sm:$0xff] %vm487, %v1531
        %s1533 = sand.u32 %s226, 1
        %s1534 = scalar_lea.sflag [#allocation4], %s1533
        %s1535 = sand.u32 %s226, 1
        %s1536 = smul.addr %s1535, 8
        %s1537 = scalar_lea.vmem [#allocation5], %s1536
        // Predicated region
        $region57: #{transformer_forward.1} parent=47 // pred_check
          %p1538 = pneg %p236
        $region58: #{transformer_forward.1} parent=47 // pred_check_branch
          %1540 = sbr.rel (%p1538) target = $region60
        $region59: #{transformer_forward.1} parent=47 // pred_region
          %s1542 = ssub.s32 128, 128
          %1543 = vsyncadd %s1534, %s1542
          %s1544 = smul.addr %s28, 128
          %s1545 = scalar_lea.hbm %s7, %s1544
          %s1547 = sshll.u32 %s1537, 4
          %s1548 = int_to_ptr.vmem [resolvable:$true] %s1547
          %1550 = dma.vmem_to_hbm [thread:$0]  %s1548, 128, %s1545, %s1534
        $region60: #{transformer_forward.1} parent=47 // pred_fallthru
          _
      $region48: #{transformer_forward.1} parent=5 // pred_fallthru
        _
      %p1551 = scmp.le.s32.totalorder 2, %s19
      // Predicated region
      $region61: #{transformer_forward.1} parent=5 // pred_check
        %p1552 = pneg %p1551
      $region62: #{transformer_forward.1} parent=5 // pred_check_branch
        %1554 = sbr.rel (%p1552) target = $region64
      $region63: #{transformer_forward.1} parent=5 // pred_region
        %s1555 = ssub.s32 %s19, 2
        // Predicated region
        $region65: #{transformer_forward.1} parent=63 // pred_check
          %p1556 = pneg %p242
        $region66: #{transformer_forward.1} parent=63 // pred_check_branch
          %1558 = sbr.rel (%p1556) target = $region68
        $region67: #{transformer_forward.1} parent=63 // pred_region
          %s1559 = sand.u32 %s227, 1
          %s1560 = scalar_lea.sflag [#allocation4], %s1559
          %s1561 = sand.u32 %s227, 1
          %s1562 = smul.addr %s1561, 8
          %s1563 = scalar_lea.vmem [#allocation5], %s1562
          %1564 = dma.done %s1560, 128
        $region68: #{transformer_forward.1} parent=63 // pred_fallthru
          _
      $region64: #{transformer_forward.1} parent=5 // pred_fallthru
        _
    $region6: #{transformer_forward.1} parent=1 // loop_footer
      %s23 = sadd.s32 1, %s19
    $region7: #{transformer_forward.1} parent=1 // loop_footer_branch
      %18 = sbr.rel target = $region3
    $region8: #{transformer_forward.1} parent=1 // loop_exit
      _
    %1565 = vsyncpa [#allocation3], 1
    %s1566 = scalar_lea.sflag [#allocation3], 1
    %1567 = vsyncpa %s1566, 1
    %1568 = vsyncpa [#allocation4], 1
    %s1569 = scalar_lea.sflag [#allocation4], 1
    %1570 = vsyncpa %s1569, 1

</llo_original>
